<compile_context>
chip_gen: v7x
topology: tpu7x:2x2x1
jax: 0.10.0
libtpu: 0.0.40
codegen_flags: <defaults>
</compile_context>

<pallas_src>
import functools

import jax
import jax.numpy as jnp
from jax import lax
from jax.experimental import pallas as pl
from jax.experimental.pallas import tpu as pltpu

EPS = 1e-5  # BatchNorm2d default eps


def _rup(x, m):
    return (x + m - 1) // m * m


# ---------------------------------------------------------------------------
# XLU sublane-roll probe (runs one tiny kernel, cached)
# ---------------------------------------------------------------------------
def _roll_probe_kernel(x_ref, o_ref):
    o_ref[...] = pltpu.roll(x_ref[...], 1, axis=2)


@functools.lru_cache(maxsize=None)
def _roll_mode():
    """Determine pltpu.roll's sublane-rotation behaviour once.

    Returns "jnp" if pltpu.roll matches jnp.roll semantics, "neg" if the shift
    sign is inverted, "slice" if the roll cannot be used (fall back to
    sublane-misaligned slices — correct, just more shuffle work on v7x).
    """
    try:
        x = lax.broadcasted_iota(jnp.float32, (1, 1, 16, 128), 2)
        r = pl.pallas_call(
            _roll_probe_kernel,
            out_shape=jax.ShapeDtypeStruct(x.shape, x.dtype),
        )(x)
        if bool(jnp.array_equal(r, jnp.roll(x, 1, axis=2))):
            return "jnp"
        if bool(jnp.array_equal(r, jnp.roll(x, -1, axis=2))):
            return "neg"
    except Exception:
        pass
    return "slice"


# ---------------------------------------------------------------------------
# In-kernel helpers
# ---------------------------------------------------------------------------
def _w_tap(y, off, Wo, roll_mode):
    """y shifted by `off` along the W (sublane) axis, cropped to Wo columns."""
    if off == 0:
        return y[:, :, 0:Wo, :]
    W = y.shape[2]
    if roll_mode == "jnp":      # jnp.roll(y, -off) == roll by W - off
        return pltpu.roll(y, W - off, axis=2)[:, :, 0:Wo, :]
    if roll_mode == "neg":
        return pltpu.roll(y, off, axis=2)[:, :, 0:Wo, :]
    return y[:, :, off:off + Wo, :]          # slice fallback


def _bn_relu(y, gamma, beta, inv_n):
    """Training-mode BatchNorm2d (biased batch var) fused with ReLU.

    Two-pass variance (mean, then centered sum of squares) for numerical
    robustness; affine folded into a single scale/shift.
    y: (N, H, W, tc); gamma/beta: (1, 1, 1, tc); inv_n = 1 / (N*H*W).
    """
    mean = jnp.sum(y, axis=(0, 1, 2), keepdims=True) * inv_n
    yc = y - mean
    var = jnp.sum(yc * yc, axis=(0, 1, 2), keepdims=True) * inv_n
    scale = gamma * lax.rsqrt(var + EPS)
    return jnp.maximum(yc * scale + beta, 0.0)


def _block_kernel(dilation, inv_n1, inv_n2, roll_mode, x_ref, p_ref, o_ref):
    d = dilation
    x = x_ref[...]                       # (N, H, W, tc) f32, channel-last
    tc = x.shape[-1]
    Ho = x.shape[1] - 2 * d
    Wo = x.shape[2] - 2 * d

    p = p_ref[...]                       # (10, tc) packed per-channel params
    wh0, wh1, wh2 = (p[i].reshape(1, 1, 1, tc) for i in range(3))
    wv0, wv1, wv2 = (p[i].reshape(1, 1, 1, tc) for i in range(3, 6))
    g1 = p[6].reshape(1, 1, 1, tc)
    b1 = p[7].reshape(1, 1, 1, tc)
    g2 = p[8].reshape(1, 1, 1, tc)
    b2 = p[9].reshape(1, 1, 1, tc)

    # Depthwise conv, kernel (3,1), dilation d, VALID.  H is an untiled axis
    # in NHWC blocks, so these shifted reads are free address offsets.
    # Conv bias omitted: cancelled exactly by BN's batch-mean subtraction.
    y = (x[:, 0:Ho] * wh0
         + x[:, d:d + Ho] * wh1
         + x[:, 2 * d:2 * d + Ho] * wh2)
    y = _bn_relu(y, g1, b1, inv_n1)

    # Depthwise conv, kernel (1,3), dilation d, VALID.  W is the sublane axis;
    # shifts go through the otherwise-idle XLU (roll) with aligned slices.
    z = (_w_tap(y, 0, Wo, roll_mode) * wv0
         + _w_tap(y, d, Wo, roll_mode) * wv1
         + _w_tap(y, 2 * d, Wo, roll_mode) * wv2)
    z = _bn_relu(z, g2, b2, inv_n2)

    o_ref[...] = z.astype(o_ref.dtype)


# ---------------------------------------------------------------------------
# VMEM budgeting / channel-tile selection
# ---------------------------------------------------------------------------
def _vmem_budget():
    """(vmem_limit_bytes, tile_selection_budget) derived per TPU generation."""
    try:
        physical = int(pltpu.get_tpu_info().vmem_capacity_bytes)
    except Exception:
        physical = 64 * 1024 * 1024      # conservative: v7x per-TC VMEM
    vmem_limit = physical * 3 // 4       # 96 MiB on 128 MiB parts, 48 MiB on v7x
    budget = vmem_limit * 4 // 5         # headroom for compiler scratch/regalloc
    return int(vmem_limit), int(budget)


def _vmem_estimate(N, H, W, Ho, Wo, tc, itemsize=4):
    """Conservative peak-VMEM estimate for one grid step (padded shapes)."""
    tcp = _rup(tc, 128)
    x_blk = N * H * _rup(W, 8) * tcp        # input block
    y_buf = N * Ho * _rup(W, 8) * tcp       # first-conv/BN intermediates
    z_buf = N * Ho * _rup(Wo, 8) * tcp      # second-conv/BN intermediates
    p_blk = _rup(10, 8) * tcp
    #   2x double-buffered input + output, params, ~4 y-sized + ~4 z-sized temps
    return itemsize * (2 * x_blk + 2 * z_buf + 2 * p_blk + 4 * y_buf + 4 * z_buf)


def _choose_channel_tile(N, C, H, W, Ho, Wo, budget_bytes):
    """Channel tile: lane-aligned (multiple of 128) unless it covers all of C,
    targeting >= 4 grid steps (DMA overlap + v7x 2-TC split) within budget."""
    if C <= 128:
        # Single full-C tile (full-extent block satisfies the lane rule).
        # TODO(synk): if even this exceeds the VMEM budget (huge N*H*W), add an
        # 'arbitrary' N/H grid axis with BN accumulators instead.
        return C
    tc = min(_rup(pl.cdiv(C, 4), 128), _rup(C, 128))   # aim for >= 4 steps
    while tc > 128 and _vmem_estimate(N, H, W, Ho, Wo, tc) > budget_bytes:
        tc -= 128
    # Nudge toward an even grid length so v7x's two TensorCores stay balanced.
    if pl.cdiv(C, tc) % 2 == 1 and tc > 128:
        for cand in range(tc - 128, 127, -128):
            if pl.cdiv(C, cand) % 2 == 0:
                tc = cand
                break
    # TODO(synk): if tc == 128 still exceeds the budget, the N/H reduction-axis
    # restructure above is required (hits v7x's 64 MiB VMEM first).
    return tc


# ---------------------------------------------------------------------------
# Wrappers
# ---------------------------------------------------------------------------
def block_forward_nhwc(x_nhwc, params, dilation=1, channel_tile=None):
    """Transpose-free production path.  x: (N, H, W, C) f32 ->
    (N, H-2d, W-2d, C) f32."""
    N, H, W, C = x_nhwc.shape
    d = int(dilation)
    Ho, Wo = H - 2 * d, W - 2 * d
    assert Ho > 0 and Wo > 0, "spatial dims too small for VALID dilated conv"

    x_nhwc = x_nhwc.astype(jnp.float32)

    # All per-channel parameters packed into one (10, C) array -> a single
    # parameter DMA per grid step.  Conv biases intentionally NOT packed
    # (training-mode BN cancels them exactly).
    p = jnp.stack(
        [params["wh"][:, 0], params["wh"][:, 1], params["wh"][:, 2],
         params["wv"][:, 0], params["wv"][:, 1], params["wv"][:, 2],
         params["g1"], params["b1"], params["g2"], params["b2"]],
        axis=0).astype(jnp.float32)                              # (10, C)

    vmem_limit, budget = _vmem_budget()
    tc = channel_tile if channel_tile is not None else \
        _choose_channel_tile(N, C, H, W, Ho, Wo, budget)
    assert tc == C or tc % 128 == 0, \
        "channel tile must equal C or be a multiple of 128 (lane width)"
    grid = (pl.cdiv(C, tc),)

    kernel = functools.partial(
        _block_kernel, d,
        1.0 / float(N * Ho * W),     # BN1 count: full W retained after conv_h
        1.0 / float(N * Ho * Wo),    # BN2 count
        _roll_mode())

    return pl.pallas_call(
        kernel,
        out_shape=jax.ShapeDtypeStruct((N, Ho, Wo, C), jnp.float32),
        grid_spec=pltpu.PrefetchScalarGridSpec(
            num_scalar_prefetch=0,
            grid=grid,
            in_specs=[
                pl.BlockSpec((N, H, W, tc), lambda c: (0, 0, 0, c)),
                pl.BlockSpec((10, tc), lambda c: (0, c)),
            ],
            out_specs=pl.BlockSpec((N, Ho, Wo, tc), lambda c: (0, 0, 0, c)),
        ),
        compiler_params=pltpu.CompilerParams(
            # Channels are fully independent; 'parallel' lets the runtime shard
            # the grid across v7x's two TensorCores (pltpu.CORE_PARALLEL is the
            # explicit alternative if profiling shows it doesn't split).
            dimension_semantics=("parallel",),
            vmem_limit_bytes=vmem_limit,
        ),
    )(x_nhwc, p)


def block_forward(x_nchw, params, dilation=1, channel_tile=None):
    """PyTorch-compatible NCHW interface.  NOTE: the two transposes below are
    pure layout plumbing, each a full HBM read+write of the tensor; keep the
    model channel-last and call block_forward_nhwc directly to avoid them."""
    x_nhwc = jnp.transpose(x_nchw.astype(jnp.float32), (0, 2, 3, 1))
    out = block_forward_nhwc(x_nhwc, params, dilation, channel_tile)
    return jnp.transpose(out, (0, 3, 1, 2))


# ---------------------------------------------------------------------------
# Deterministic parameter init (PyTorch-like shapes/defaults)
# ---------------------------------------------------------------------------
def init_params(key, planes):
    k1, k2, k3, k4 = jax.random.split(key, 4)
    bound = 1.0 / jnp.sqrt(3.0)  # fan_in of a depthwise 3-tap kernel = 3
    return dict(
        wh=jax.random.uniform(k1, (planes, 3), jnp.float32, -bound, bound),
        bh=jax.random.uniform(k2, (planes,), jnp.float32, -bound, bound),
        wv=jax.random.uniform(k3, (planes, 3), jnp.float32, -bound, bound),
        bv=jax.random.uniform(k4, (planes,), jnp.float32, -bound, bound),
        g1=jnp.ones((planes,), jnp.float32),
        b1=jnp.zeros((planes,), jnp.float32),
        g2=jnp.ones((planes,), jnp.float32),
        b2=jnp.zeros((planes,), jnp.float32),
    )


# ---------------------------------------------------------------------------
# Pure-JAX reference (spec-exact: conv biases included, two-pass BN)
# ---------------------------------------------------------------------------
def reference_forward(x, params, dilation=1):
    C = x.shape[1]

    def dwconv(inp, w4, b, dil):
        y = lax.conv_general_dilated(
            inp, w4, window_strides=(1, 1), padding="VALID",
            rhs_dilation=(dil, dil),
            dimension_numbers=("NCHW", "OIHW", "NCHW"),
            feature_group_count=C)
        return y + b.reshape(1, -1, 1, 1)

    def bn_relu(y, g, b):
        mean = jnp.mean(y, axis=(0, 2, 3), keepdims=True)
        var = jnp.mean(jnp.square(y - mean), axis=(0, 2, 3), keepdims=True)
        out = (y - mean) * lax.rsqrt(var + EPS) * g.reshape(1, -1, 1, 1) \
              + b.reshape(1, -1, 1, 1)
        return jnp.maximum(out, 0.0)

    wh4 = params["wh"].reshape(C, 1, 3, 1)
    wv4 = params["wv"].reshape(C, 1, 1, 3)
    y = bn_relu(dwconv(x, wh4, params["bh"], dilation),
                params["g1"], params["b1"])
    z = bn_relu(dwconv(y, wv4, params["bv"], dilation),
                params["g2"], params["b2"])
    return z


if __name__ == "__main__":
    key = jax.random.PRNGKey(0)
    k_x, k_p, k_x2, k_p2 = jax.random.split(key, 4)

    # Case 1: module-exact NCHW interface, small shapes, dilation=1.
    N, C, H, W, d = 2, 4, 16, 16, 1
    x = jax.random.normal(k_x, (N, C, H, W), dtype=jnp.float32)
    params = init_params(k_p, C)
    out = jax.block_until_ready(block_forward(x, params, dilation=d))
    ref = jax.block_until_ready(reference_forward(x, params, dilation=d))
    assert out.shape == (N, C, H - 2 * d, W - 2 * d)
    err = float(jnp.max(jnp.abs(out - ref)))
    assert err < 1e-4, f"case1 max abs err {err}"

    # Case 2: transpose-free channel-last path, lane-dense multi-step grid
    # (C=256 -> auto channel tile 128 -> 2 grid steps), dilation=2.
    N2, C2, H2, W2, d2 = 2, 256, 16, 16, 2
    x2 = jax.random.normal(k_x2, (N2, C2, H2, W2), dtype=jnp.float32)
    params2 = init_params(k_p2, C2)
    x2_nhwc = jnp.transpose(x2, (0, 2, 3, 1))   # model assumed channel-last
    out2 = jax.block_until_ready(
        block_forward_nhwc(x2_nhwc, params2, dilation=d2))
    ref2 = jax.block_until_ready(reference_forward(x2, params2, dilation=d2))
    assert out2.shape == (N2, H2 - 2 * d2, W2 - 2 * d2, C2)
    err2 = float(jnp.max(jnp.abs(out2 - jnp.transpose(ref2, (0, 2, 3, 1)))))
    assert err2 < 1e-4, f"case2 max abs err {err2}"

    print("KERNEL_OK")
</pallas_src>

<mosaic_0001>
module attributes {stable_mosaic.version = 11 : i64} {
  func.func @_roll_probe_kernel(%arg0: memref<1x1x16x128xf32, #tpu.memory_space<vmem>>, %arg1: memref<1x1x16x128xf32, #tpu.memory_space<vmem>>) attributes {dimension_semantics = [], scalar_prefetch = 0 : i64, scratch_operands = 0 : i64, tpu.core_type = #tpu.core_type<tc>} {
    %c0 = arith.constant 0 : index
    %c0_0 = arith.constant 0 : index
    %c0_1 = arith.constant 0 : index
    %c0_2 = arith.constant 0 : index
    %0 = vector.load %arg0[%c0, %c0_0, %c0_1, %c0_2] : memref<1x1x16x128xf32, #tpu.memory_space<vmem>>, vector<1x1x16x128xf32>
    %c1_i32 = arith.constant 1 : i32
    %1 = tpu.dynamic_rotate %0 by %c1_i32 dim 2 : vector<1x1x16x128xf32>, i32 -> vector<1x1x16x128xf32>
    %c0_3 = arith.constant 0 : index
    %c0_4 = arith.constant 0 : index
    %c0_5 = arith.constant 0 : index
    %c0_6 = arith.constant 0 : index
    %2 = vector.load %arg1[%c0_3, %c0_4, %c0_5, %c0_6] : memref<1x1x16x128xf32, #tpu.memory_space<vmem>>, vector<1x1x16x128xf32>
    tpu.vector_store %arg1[%c0_3, %c0_4, %c0_5, %c0_6], %1 {strides = array<i32>} : memref<1x1x16x128xf32, #tpu.memory_space<vmem>>, vector<1x1x16x128xf32>,
    return
  }
}

module attributes {stable_mosaic.version = 11 : i64} {
  func.func @_block_kernel(%arg0: i32, %arg1: memref<2x16x16x4xf32, #tpu.memory_space<vmem>>, %arg2: memref<10x4xf32, #tpu.memory_space<vmem>>, %arg3: memref<2x14x14x4xf32, #tpu.memory_space<vmem>>) attributes {dimension_semantics = [#tpu.dimension_semantics<parallel>], iteration_bounds = array<i64: 1>, scalar_prefetch = 0 : i64, scratch_operands = 0 : i64, tpu.core_type = #tpu.core_type<tc>, window_params = [{transform_indices = @transform_0, window_bounds = array<i64: 2, 16, 16, 4>}, {transform_indices = @transform_1, window_bounds = array<i64: 10, 4>}, {transform_indices = @transform_2, window_bounds = array<i64: 2, 14, 14, 4>}]} {
    %c0 = arith.constant 0 : index
    %c0_0 = arith.constant 0 : index
    %c0_1 = arith.constant 0 : index
    %c0_2 = arith.constant 0 : index
    %0 = vector.load %arg1[%c0, %c0_0, %c0_1, %c0_2] : memref<2x16x16x4xf32, #tpu.memory_space<vmem>>, vector<2x16x16x4xf32>
    %c0_3 = arith.constant 0 : index
    %c0_4 = arith.constant 0 : index
    %1 = vector.load %arg2[%c0_3, %c0_4] : memref<10x4xf32, #tpu.memory_space<vmem>>, vector<10x4xf32>
    %2 = vector.extract_strided_slice %1 {offsets = [0, 0], sizes = [1, 4], strides = [1, 1]} : vector<10x4xf32> to vector<1x4xf32>
    %3 = vector.shape_cast %2 : vector<1x4xf32> to vector<4xf32>
    %4 = vector.shape_cast %3 : vector<4xf32> to vector<1x1x1x4xf32>
    %5 = vector.extract_strided_slice %1 {offsets = [1, 0], sizes = [1, 4], strides = [1, 1]} : vector<10x4xf32> to vector<1x4xf32>
    %6 = vector.shape_cast %5 : vector<1x4xf32> to vector<4xf32>
    %7 = vector.shape_cast %6 : vector<4xf32> to vector<1x1x1x4xf32>
    %8 = vector.extract_strided_slice %1 {offsets = [2, 0], sizes = [1, 4], strides = [1, 1]} : vector<10x4xf32> to vector<1x4xf32>
    %9 = vector.shape_cast %8 : vector<1x4xf32> to vector<4xf32>
    %10 = vector.shape_cast %9 : vector<4xf32> to vector<1x1x1x4xf32>
    %11 = vector.extract_strided_slice %1 {offsets = [3, 0], sizes = [1, 4], strides = [1, 1]} : vector<10x4xf32> to vector<1x4xf32>
    %12 = vector.shape_cast %11 : vector<1x4xf32> to vector<4xf32>
    %13 = vector.shape_cast %12 : vector<4xf32> to vector<1x1x1x4xf32>
    %14 = vector.extract_strided_slice %1 {offsets = [4, 0], sizes = [1, 4], strides = [1, 1]} : vector<10x4xf32> to vector<1x4xf32>
    %15 = vector.shape_cast %14 : vector<1x4xf32> to vector<4xf32>
    %16 = vector.shape_cast %15 : vector<4xf32> to vector<1x1x1x4xf32>
    %17 = vector.extract_strided_slice %1 {offsets = [5, 0], sizes = [1, 4], strides = [1, 1]} : vector<10x4xf32> to vector<1x4xf32>
    %18 = vector.shape_cast %17 : vector<1x4xf32> to vector<4xf32>
    %19 = vector.shape_cast %18 : vector<4xf32> to vector<1x1x1x4xf32>
    %20 = vector.extract_strided_slice %1 {offsets = [6, 0], sizes = [1, 4], strides = [1, 1]} : vector<10x4xf32> to vector<1x4xf32>
    %21 = vector.shape_cast %20 : vector<1x4xf32> to vector<4xf32>
    %22 = vector.shape_cast %21 : vector<4xf32> to vector<1x1x1x4xf32>
    %23 = vector.extract_strided_slice %1 {offsets = [7, 0], sizes = [1, 4], strides = [1, 1]} : vector<10x4xf32> to vector<1x4xf32>
    %24 = vector.shape_cast %23 : vector<1x4xf32> to vector<4xf32>
    %25 = vector.shape_cast %24 : vector<4xf32> to vector<1x1x1x4xf32>
    %26 = vector.extract_strided_slice %1 {offsets = [8, 0], sizes = [1, 4], strides = [1, 1]} : vector<10x4xf32> to vector<1x4xf32>
    %27 = vector.shape_cast %26 : vector<1x4xf32> to vector<4xf32>
    %28 = vector.shape_cast %27 : vector<4xf32> to vector<1x1x1x4xf32>
    %29 = vector.extract_strided_slice %1 {offsets = [9, 0], sizes = [1, 4], strides = [1, 1]} : vector<10x4xf32> to vector<1x4xf32>
    %30 = vector.shape_cast %29 : vector<1x4xf32> to vector<4xf32>
    %31 = vector.shape_cast %30 : vector<4xf32> to vector<1x1x1x4xf32>
    %32 = vector.extract_strided_slice %0 {offsets = [0, 0, 0, 0], sizes = [2, 14, 16, 4], strides = [1, 1, 1, 1]} : vector<2x16x16x4xf32> to vector<2x14x16x4xf32>
    %33 = vector.broadcast %4 : vector<1x1x1x4xf32> to vector<2x14x16x4xf32>
    %34 = arith.mulf %32, %33 : vector<2x14x16x4xf32>
    %35 = vector.extract_strided_slice %0 {offsets = [0, 1, 0, 0], sizes = [2, 14, 16, 4], strides = [1, 1, 1, 1]} : vector<2x16x16x4xf32> to vector<2x14x16x4xf32>
    %36 = vector.broadcast %7 : vector<1x1x1x4xf32> to vector<2x14x16x4xf32>
    %37 = arith.mulf %35, %36 : vector<2x14x16x4xf32>
    %38 = arith.addf %34, %37 : vector<2x14x16x4xf32>
    %39 = vector.extract_strided_slice %0 {offsets = [0, 2, 0, 0], sizes = [2, 14, 16, 4], strides = [1, 1, 1, 1]} : vector<2x16x16x4xf32> to vector<2x14x16x4xf32>
    %40 = vector.broadcast %10 : vector<1x1x1x4xf32> to vector<2x14x16x4xf32>
    %41 = arith.mulf %39, %40 : vector<2x14x16x4xf32>
    %42 = arith.addf %38, %41 : vector<2x14x16x4xf32>
    %cst = arith.constant dense<0.000000e+00> : vector<4xf32>
    %43 = vector.multi_reduction <add>, %42, %cst [0, 1, 2] : vector<2x14x16x4xf32> to vector<4xf32>
    %44 = vector.shape_cast %43 : vector<4xf32> to vector<1x1x1x4xf32>
    %cst_5 = arith.constant 0.00223214296 : f32
    %45 = vector.broadcast %cst_5 : f32 to vector<1x1x1x4xf32>
    %46 = arith.mulf %44, %45 : vector<1x1x1x4xf32>
    %47 = vector.broadcast %46 : vector<1x1x1x4xf32> to vector<2x14x16x4xf32>
    %48 = arith.subf %42, %47 : vector<2x14x16x4xf32>
    %49 = arith.mulf %48, %48 : vector<2x14x16x4xf32>
    %cst_6 = arith.constant dense<0.000000e+00> : vector<4xf32>
    %50 = vector.multi_reduction <add>, %49, %cst_6 [0, 1, 2] : vector<2x14x16x4xf32> to vector<4xf32>
    %51 = vector.shape_cast %50 : vector<4xf32> to vector<1x1x1x4xf32>
    %cst_7 = arith.constant 0.00223214296 : f32
    %52 = vector.broadcast %cst_7 : f32 to vector<1x1x1x4xf32>
    %53 = arith.mulf %51, %52 : vector<1x1x1x4xf32>
    %cst_8 = arith.constant 9.99999974E-6 : f32
    %54 = vector.broadcast %cst_8 : f32 to vector<1x1x1x4xf32>
    %55 = arith.addf %53, %54 : vector<1x1x1x4xf32>
    %56 = math.rsqrt %55 : vector<1x1x1x4xf32>
    %57 = arith.mulf %22, %56 : vector<1x1x1x4xf32>
    %58 = vector.broadcast %57 : vector<1x1x1x4xf32> to vector<2x14x16x4xf32>
    %59 = arith.mulf %48, %58 : vector<2x14x16x4xf32>
    %60 = vector.broadcast %25 : vector<1x1x1x4xf32> to vector<2x14x16x4xf32>
    %61 = arith.addf %59, %60 : vector<2x14x16x4xf32>
    %cst_9 = arith.constant 0.000000e+00 : f32
    %62 = vector.broadcast %cst_9 : f32 to vector<2x14x16x4xf32>
    %63 = arith.maximumf %61, %62 : vector<2x14x16x4xf32>
    %64 = vector.extract_strided_slice %63 {offsets = [0, 0, 0, 0], sizes = [2, 14, 14, 4], strides = [1, 1, 1, 1]} : vector<2x14x16x4xf32> to vector<2x14x14x4xf32>
    %65 = vector.broadcast %13 : vector<1x1x1x4xf32> to vector<2x14x14x4xf32>
    %66 = arith.mulf %64, %65 : vector<2x14x14x4xf32>
    %67 = vector.extract_strided_slice %63 {offsets = [0, 0, 1, 0], sizes = [2, 14, 14, 4], strides = [1, 1, 1, 1]} : vector<2x14x16x4xf32> to vector<2x14x14x4xf32>
    %68 = vector.broadcast %16 : vector<1x1x1x4xf32> to vector<2x14x14x4xf32>
    %69 = arith.mulf %67, %68 : vector<2x14x14x4xf32>
    %70 = arith.addf %66, %69 : vector<2x14x14x4xf32>
    %71 = vector.extract_strided_slice %63 {offsets = [0, 0, 2, 0], sizes = [2, 14, 14, 4], strides = [1, 1, 1, 1]} : vector<2x14x16x4xf32> to vector<2x14x14x4xf32>
    %72 = vector.broadcast %19 : vector<1x1x1x4xf32> to vector<2x14x14x4xf32>
    %73 = arith.mulf %71, %72 : vector<2x14x14x4xf32>
    %74 = arith.addf %70, %73 : vector<2x14x14x4xf32>
    %cst_10 = arith.constant dense<0.000000e+00> : vector<4xf32>
    %75 = vector.multi_reduction <add>, %74, %cst_10 [0, 1, 2] : vector<2x14x14x4xf32> to vector<4xf32>
    %76 = vector.shape_cast %75 : vector<4xf32> to vector<1x1x1x4xf32>
    %cst_11 = arith.constant 0.00255102036 : f32
    %77 = vector.broadcast %cst_11 : f32 to vector<1x1x1x4xf32>
    %78 = arith.mulf %76, %77 : vector<1x1x1x4xf32>
    %79 = vector.broadcast %78 : vector<1x1x1x4xf32> to vector<2x14x14x4xf32>
    %80 = arith.subf %74, %79 : vector<2x14x14x4xf32>
    %81 = arith.mulf %80, %80 : vector<2x14x14x4xf32>
    %cst_12 = arith.constant dense<0.000000e+00> : vector<4xf32>
    %82 = vector.multi_reduction <add>, %81, %cst_12 [0, 1, 2] : vector<2x14x14x4xf32> to vector<4xf32>
    %83 = vector.shape_cast %82 : vector<4xf32> to vector<1x1x1x4xf32>
    %cst_13 = arith.constant 0.00255102036 : f32
    %84 = vector.broadcast %cst_13 : f32 to vector<1x1x1x4xf32>
    %85 = arith.mulf %83, %84 : vector<1x1x1x4xf32>
    %cst_14 = arith.constant 9.99999974E-6 : f32
    %86 = vector.broadcast %cst_14 : f32 to vector<1x1x1x4xf32>
    %87 = arith.addf %85, %86 : vector<1x1x1x4xf32>
    %88 = math.rsqrt %87 : vector<1x1x1x4xf32>
    %89 = arith.mulf %28, %88 : vector<1x1x1x4xf32>
    %90 = vector.broadcast %89 : vector<1x1x1x4xf32> to vector<2x14x14x4xf32>
    %91 = arith.mulf %80, %90 : vector<2x14x14x4xf32>
    %92 = vector.broadcast %31 : vector<1x1x1x4xf32> to vector<2x14x14x4xf32>
    %93 = arith.addf %91, %92 : vector<2x14x14x4xf32>
    %cst_15 = arith.constant 0.000000e+00 : f32
    %94 = vector.broadcast %cst_15 : f32 to vector<2x14x14x4xf32>
    %95 = arith.maximumf %93, %94 : vector<2x14x14x4xf32>
    %c0_16 = arith.constant 0 : index
    %c0_17 = arith.constant 0 : index
    %c0_18 = arith.constant 0 : index
    %c0_19 = arith.constant 0 : index
    %96 = vector.load %arg3[%c0_16, %c0_17, %c0_18, %c0_19] : memref<2x14x14x4xf32, #tpu.memory_space<vmem>>, vector<2x14x14x4xf32>
    tpu.vector_store %arg3[%c0_16, %c0_17, %c0_18, %c0_19], %95 {strides = array<i32>} : memref<2x14x14x4xf32, #tpu.memory_space<vmem>>, vector<2x14x14x4xf32>,
    return
  }
  func.func @transform_0(%arg0: i32) -> (i32, i32, i32, i32) {
    %c0_i32 = arith.constant 0 : i32
    %c0_i32_0 = arith.constant 0 : i32
    %c0_i32_1 = arith.constant 0 : i32
    %c0_i32_2 = arith.constant 0 : i32
    return %c0_i32, %c0_i32_0, %c0_i32_1, %arg0 : i32, i32, i32, i32
  }
  func.func @transform_1(%arg0: i32) -> (i32, i32) {
    %c0_i32 = arith.constant 0 : i32
    %c0_i32_0 = arith.constant 0 : i32
    return %c0_i32, %arg0 : i32, i32
  }
  func.func @transform_2(%arg0: i32) -> (i32, i32, i32, i32) {
    %c0_i32 = arith.constant 0 : i32
    %c0_i32_0 = arith.constant 0 : i32
    %c0_i32_1 = arith.constant 0 : i32
    %c0_i32_2 = arith.constant 0 : i32
    return %c0_i32, %c0_i32_0, %c0_i32_1, %arg0 : i32, i32, i32, i32
  }
}

</mosaic_0001>

<llo_original>
// kernel: tpu_custom_call.1
$region0: #{tpu_custom_call.1}
  #allocation0 [shape = 'u32[]', space=smem, size = 0x4, offset = 0x4, fixed_abs, tag = 'smem constant byte address 0x4 - core index']
  #allocation1 [shape = 'u32[144,128]{1,0:T(1,128)}', space=vmem, size = 0x12000, scoped, tag = 'internal scratch']
  %s0 = inlined_call_operand.hbm [shape: f32[1,1,16,128], index: 0, kind: input, shape index: {}]
  %s1 = inlined_call_operand.hbm [shape: f32[1,1,16,128], index: 1, kind: output, shape index: {}]
  %s2 = sld [smem:[#allocation0]]
  $region18: #{tpu_custom_call.1} parent=0
    _
  %s4 = ssub.s32 1, %s2
  %s5 = scalar_select 0, %s4, %s2
  $region1: #{tpu_custom_call.1} parent=0
    #allocation2 [shape = 'u8[8192]{0}', space=vmem, size = 0x2000, scoped, tag = 'input window, operand 0, single buffered']
    #allocation3 [shape = 's32[1]{0}', space=sflag, size = 0x4, scoped, tag = 'scoped memory for tpu_custom_call.1']
    #allocation4 [shape = 's32[1]{0}', space=sflag, size = 0x4, scoped, tag = 'scoped memory for tpu_custom_call.1']
    #allocation5 [shape = 'u8[8192]{0}', space=vmem, size = 0x2000, scoped, tag = 'output window, operand 0, single buffered']
    %6 = vsyncpa [#allocation3], 0
    %7 = vsyncpa [#allocation4], 0
    // Predicated region
    $region2: #{tpu_custom_call.1} parent=1 // pred_check
      _
    $region3: #{tpu_custom_call.1} parent=1 // pred_check_branch
      %9 = sbr.rel (0) target = $region5
    $region4: #{tpu_custom_call.1} parent=1 // pred_region
      %s11 = ssub.s32 256, 256
      %12 = vsyncadd [#allocation3], %s11
      %s13 = sshll.u32 [#allocation2], 4
      %s14 = int_to_ptr.vmem [resolvable:$true] %s13
      %19 = dma.hbm_to_vmem [thread:$0]  %s0, 256, %s14, [#allocation3], 128, 128, 8
    $region5: #{tpu_custom_call.1} parent=1 // pred_fallthru
      _
    // Predicated region
    $region6: #{tpu_custom_call.1} parent=1 // pred_check
      _
    $region7: #{tpu_custom_call.1} parent=1 // pred_check_branch
      %21 = sbr.rel (0) target = $region9
    $region8: #{tpu_custom_call.1} parent=1 // pred_region
      %22 = dma.done [#allocation3], 256
    $region9: #{tpu_custom_call.1} parent=1 // pred_fallthru
      _
    %v23 = vld [vmem:[#allocation2] sm:$0xff]
    %v24 = vld [vmem:[#allocation2 + $0x8] sm:$0xff]
    %v25 = vrot.slane %v23, 7
    %v26 = vrot.slane %v24, 7
    %v27 = vlaneseq
    %v28 = vshrl.u32 %v27, 7
    %vm29 = vcmp.lt.s32.totalorder %v28, 1
    %v30 = vsel %vm29, %v25, %v26
    %v31 = vsel %vm29, %v26, %v25
    %32 = vst [vmem:[#allocation5] sm:$0xff] %v31
    %33 = vst [vmem:[#allocation5 + $0x8] sm:$0xff] %v30
    // Predicated region
    $region10: #{tpu_custom_call.1} parent=1 // pred_check
      _
    $region11: #{tpu_custom_call.1} parent=1 // pred_check_branch
      %35 = sbr.rel (0) target = $region13
    $region12: #{tpu_custom_call.1} parent=1 // pred_region
      %s37 = ssub.s32 256, 256
      %38 = vsyncadd [#allocation4], %s37
      %s39 = sshll.u32 [#allocation5], 4
      %s40 = int_to_ptr.vmem [resolvable:$true] %s39
      %45 = dma.vmem_to_hbm [thread:$0]  %s40, 256, %s1, [#allocation4], 128, 128, 8
    $region13: #{tpu_custom_call.1} parent=1 // pred_fallthru
      _
    // Predicated region
    $region14: #{tpu_custom_call.1} parent=1 // pred_check
      _
    $region15: #{tpu_custom_call.1} parent=1 // pred_check_branch
      %47 = sbr.rel (0) target = $region17
    $region16: #{tpu_custom_call.1} parent=1 // pred_region
      %48 = dma.done [#allocation4], 256
    $region17: #{tpu_custom_call.1} parent=1 // pred_fallthru
      _
    %49 = vsyncpa [#allocation3], 1
    %50 = vsyncpa [#allocation4], 1

// kernel: tpu_custom_call.1
$region0: #{tpu_custom_call.1}
  #allocation0 [shape = 'u32[]', space=smem, size = 0x4, offset = 0x4, fixed_abs, tag = 'smem constant byte address 0x4 - core index']
  #allocation1 [shape = 'u32[144,128]{1,0:T(1,128)}', space=vmem, size = 0x12000, scoped, tag = 'internal scratch']
  %s0 = inlined_call_operand.vmem [shape: f32[2,16,16,4], index: 0, kind: input, shape index: {}]
  %s1 = inlined_call_operand.vmem [shape: f32[10,4], index: 1, kind: input, shape index: {}]
  %s2 = inlined_call_operand.vmem [shape: f32[2,14,14,4], index: 2, kind: output, shape index: {}]
  %s3 = sld [smem:[#allocation0]]
  $region18: #{tpu_custom_call.1} parent=0
    _
  %s5 = ssub.s32 1, %s3
  %s6 = scalar_select 0, %s5, %s3
  // Predicated region
  $region2: #{tpu_custom_call.1} parent=0 // pred_check
    _
  $region3: #{tpu_custom_call.1} parent=0 // pred_check_branch
    %8 = sbr.rel (0) target = $region5
  $region4: #{tpu_custom_call.1} parent=0 // pred_region
    _
  $region5: #{tpu_custom_call.1} parent=0 // pred_fallthru
    _
  // Predicated region
  $region6: #{tpu_custom_call.1} parent=0 // pred_check
    _
  $region7: #{tpu_custom_call.1} parent=0 // pred_check_branch
    %10 = sbr.rel (0) target = $region9
  $region8: #{tpu_custom_call.1} parent=0 // pred_region
    _
  $region9: #{tpu_custom_call.1} parent=0 // pred_fallthru
    _
  %v11 = vld [vmem:[%s0] sm:$0xff]
  %v12 = vld [vmem:[%s0 + $0x8] sm:$0xff]
  %v13 = vld [vmem:[%s0 + $0x10] sm:$0xff]
  %v14 = vld [vmem:[%s0 + $0x18] sm:$0xff]
  %v15 = vld [vmem:[%s0 + $0x20] sm:$0xff]
  %v16 = vld [vmem:[%s0 + $0x28] sm:$0xff]
  %v17 = vld [vmem:[%s0 + $0x30] sm:$0xff]
  %v18 = vld [vmem:[%s0 + $0x38] sm:$0xff]
  %v19 = vld [vmem:[%s0 + $0x40] sm:$0xff]
  %v20 = vld [vmem:[%s0 + $0x48] sm:$0xff]
  %v21 = vld [vmem:[%s0 + $0x50] sm:$0xff]
  %v22 = vld [vmem:[%s0 + $0x58] sm:$0xff]
  %v23 = vld [vmem:[%s0 + $0x60] sm:$0xff]
  %v24 = vld [vmem:[%s0 + $0x68] sm:$0xff]
  %v25 = vld [vmem:[%s0 + $0x70] sm:$0xff]
  %v26 = vld [vmem:[%s0 + $0x78] sm:$0xff]
  %v27 = vld [vmem:[%s0 + $0x80] sm:$0xff]
  %v28 = vld [vmem:[%s0 + $0x88] sm:$0xff]
  %v29 = vld [vmem:[%s0 + $0x90] sm:$0xff]
  %v30 = vld [vmem:[%s0 + $0x98] sm:$0xff]
  %v31 = vld [vmem:[%s0 + $0xa0] sm:$0xff]
  %v32 = vld [vmem:[%s0 + $0xa8] sm:$0xff]
  %v33 = vld [vmem:[%s0 + $0xb0] sm:$0xff]
  %v34 = vld [vmem:[%s0 + $0xb8] sm:$0xff]
  %v35 = vld [vmem:[%s0 + $0xc0] sm:$0xff]
  %v36 = vld [vmem:[%s0 + $0xc8] sm:$0xff]
  %v37 = vld [vmem:[%s0 + $0xd0] sm:$0xff]
  %v38 = vld [vmem:[%s0 + $0xd8] sm:$0xff]
  %v39 = vld [vmem:[%s0 + $0xe0] sm:$0xff]
  %v40 = vld [vmem:[%s0 + $0xe8] sm:$0xff]
  %v41 = vld [vmem:[%s0 + $0xf0] sm:$0xff]
  %v42 = vld [vmem:[%s0 + $0xf8] sm:$0xff]
  %v43 = vld [vmem:[%s0 + $0x100] sm:$0xff]
  %v44 = vld [vmem:[%s0 + $0x108] sm:$0xff]
  %v45 = vld [vmem:[%s0 + $0x110] sm:$0xff]
  %v46 = vld [vmem:[%s0 + $0x118] sm:$0xff]
  %v47 = vld [vmem:[%s0 + $0x120] sm:$0xff]
  %v48 = vld [vmem:[%s0 + $0x128] sm:$0xff]
  %v49 = vld [vmem:[%s0 + $0x130] sm:$0xff]
  %v50 = vld [vmem:[%s0 + $0x138] sm:$0xff]
  %v51 = vld [vmem:[%s0 + $0x140] sm:$0xff]
  %v52 = vld [vmem:[%s0 + $0x148] sm:$0xff]
  %v53 = vld [vmem:[%s0 + $0x150] sm:$0xff]
  %v54 = vld [vmem:[%s0 + $0x158] sm:$0xff]
  %v55 = vld [vmem:[%s0 + $0x160] sm:$0xff]
  %v56 = vld [vmem:[%s0 + $0x168] sm:$0xff]
  %v57 = vld [vmem:[%s0 + $0x170] sm:$0xff]
  %v58 = vld [vmem:[%s0 + $0x178] sm:$0xff]
  %v59 = vld [vmem:[%s0 + $0x180] sm:$0xff]
  %v60 = vld [vmem:[%s0 + $0x188] sm:$0xff]
  %v61 = vld [vmem:[%s0 + $0x190] sm:$0xff]
  %v62 = vld [vmem:[%s0 + $0x198] sm:$0xff]
  %v63 = vld [vmem:[%s0 + $0x1a0] sm:$0xff]
  %v64 = vld [vmem:[%s0 + $0x1a8] sm:$0xff]
  %v65 = vld [vmem:[%s0 + $0x1b0] sm:$0xff]
  %v66 = vld [vmem:[%s0 + $0x1b8] sm:$0xff]
  %v67 = vld [vmem:[%s0 + $0x1c0] sm:$0xff]
  %v68 = vld [vmem:[%s0 + $0x1c8] sm:$0xff]
  %v69 = vld [vmem:[%s0 + $0x1d0] sm:$0xff]
  %v70 = vld [vmem:[%s0 + $0x1d8] sm:$0xff]
  %v71 = vld [vmem:[%s0 + $0x1e0] sm:$0xff]
  %v72 = vld [vmem:[%s0 + $0x1e8] sm:$0xff]
  %v73 = vld [vmem:[%s0 + $0x1f0] sm:$0xff]
  %v74 = vld [vmem:[%s0 + $0x1f8] sm:$0xff]
  %v75 = vld [vmem:[%s1] sm:$0xff]
  %v76 = vld [vmem:[%s1 + $0x8] sm:$0x3]
  %v77 = vlaneseq
  %v78 = vshrl.u32 %v77, 7
  %v79 = vsub.s32 0, %v78
  %v80 = vrot.slane %v75, %v79
  %v81 = vmul.f32 %v11, %v80
  %v82 = vmul.f32 %v12, %v80
  %v83 = vmul.f32 %v13, %v80
  %v84 = vmul.f32 %v14, %v80
  %v85 = vmul.f32 %v15, %v80
  %v86 = vmul.f32 %v16, %v80
  %v87 = vmul.f32 %v17, %v80
  %v88 = vmul.f32 %v18, %v80
  %v89 = vmul.f32 %v19, %v80
  %v90 = vmul.f32 %v20, %v80
  %v91 = vmul.f32 %v21, %v80
  %v92 = vmul.f32 %v22, %v80
  %v93 = vmul.f32 %v23, %v80
  %v94 = vmul.f32 %v24, %v80
  %v95 = vmul.f32 %v25, %v80
  %v96 = vmul.f32 %v26, %v80
  %v97 = vmul.f32 %v27, %v80
  %v98 = vmul.f32 %v28, %v80
  %v99 = vmul.f32 %v29, %v80
  %v100 = vmul.f32 %v30, %v80
  %v101 = vmul.f32 %v31, %v80
  %v102 = vmul.f32 %v32, %v80
  %v103 = vmul.f32 %v33, %v80
  %v104 = vmul.f32 %v34, %v80
  %v105 = vmul.f32 %v35, %v80
  %v106 = vmul.f32 %v36, %v80
  %v107 = vmul.f32 %v37, %v80
  %v108 = vmul.f32 %v38, %v80
  %v109 = vmul.f32 %v43, %v80
  %v110 = vmul.f32 %v44, %v80
  %v111 = vmul.f32 %v45, %v80
  %v112 = vmul.f32 %v46, %v80
  %v113 = vmul.f32 %v47, %v80
  %v114 = vmul.f32 %v48, %v80
  %v115 = vmul.f32 %v49, %v80
  %v116 = vmul.f32 %v50, %v80
  %v117 = vmul.f32 %v51, %v80
  %v118 = vmul.f32 %v52, %v80
  %v119 = vmul.f32 %v53, %v80
  %v120 = vmul.f32 %v54, %v80
  %v121 = vmul.f32 %v55, %v80
  %v122 = vmul.f32 %v56, %v80
  %v123 = vmul.f32 %v57, %v80
  %v124 = vmul.f32 %v58, %v80
  %v125 = vmul.f32 %v59, %v80
  %v126 = vmul.f32 %v60, %v80
  %v127 = vmul.f32 %v61, %v80
  %v128 = vmul.f32 %v62, %v80
  %v129 = vmul.f32 %v63, %v80
  %v130 = vmul.f32 %v64, %v80
  %v131 = vmul.f32 %v65, %v80
  %v132 = vmul.f32 %v66, %v80
  %v133 = vmul.f32 %v67, %v80
  %v134 = vmul.f32 %v68, %v80
  %v135 = vmul.f32 %v69, %v80
  %v136 = vmul.f32 %v70, %v80
  %v137 = vlaneseq
  %v138 = vshrl.u32 %v137, 7
  %v139 = vsub.s32 1, %v138
  %v140 = vrot.slane %v75, %v139
  %v141 = vmul.f32 %v13, %v140
  %v142 = vmul.f32 %v14, %v140
  %v143 = vmul.f32 %v15, %v140
  %v144 = vmul.f32 %v16, %v140
  %v145 = vmul.f32 %v17, %v140
  %v146 = vmul.f32 %v18, %v140
  %v147 = vmul.f32 %v19, %v140
  %v148 = vmul.f32 %v20, %v140
  %v149 = vmul.f32 %v21, %v140
  %v150 = vmul.f32 %v22, %v140
  %v151 = vmul.f32 %v23, %v140
  %v152 = vmul.f32 %v24, %v140
  %v153 = vmul.f32 %v25, %v140
  %v154 = vmul.f32 %v26, %v140
  %v155 = vmul.f32 %v27, %v140
  %v156 = vmul.f32 %v28, %v140
  %v157 = vmul.f32 %v29, %v140
  %v158 = vmul.f32 %v30, %v140
  %v159 = vmul.f32 %v31, %v140
  %v160 = vmul.f32 %v32, %v140
  %v161 = vmul.f32 %v33, %v140
  %v162 = vmul.f32 %v34, %v140
  %v163 = vmul.f32 %v35, %v140
  %v164 = vmul.f32 %v36, %v140
  %v165 = vmul.f32 %v37, %v140
  %v166 = vmul.f32 %v38, %v140
  %v167 = vmul.f32 %v39, %v140
  %v168 = vmul.f32 %v40, %v140
  %v169 = vmul.f32 %v45, %v140
  %v170 = vmul.f32 %v46, %v140
  %v171 = vmul.f32 %v47, %v140
  %v172 = vmul.f32 %v48, %v140
  %v173 = vmul.f32 %v49, %v140
  %v174 = vmul.f32 %v50, %v140
  %v175 = vmul.f32 %v51, %v140
  %v176 = vmul.f32 %v52, %v140
  %v177 = vmul.f32 %v53, %v140
  %v178 = vmul.f32 %v54, %v140
  %v179 = vmul.f32 %v55, %v140
  %v180 = vmul.f32 %v56, %v140
  %v181 = vmul.f32 %v57, %v140
  %v182 = vmul.f32 %v58, %v140
  %v183 = vmul.f32 %v59, %v140
  %v184 = vmul.f32 %v60, %v140
  %v185 = vmul.f32 %v61, %v140
  %v186 = vmul.f32 %v62, %v140
  %v187 = vmul.f32 %v63, %v140
  %v188 = vmul.f32 %v64, %v140
  %v189 = vmul.f32 %v65, %v140
  %v190 = vmul.f32 %v66, %v140
  %v191 = vmul.f32 %v67, %v140
  %v192 = vmul.f32 %v68, %v140
  %v193 = vmul.f32 %v69, %v140
  %v194 = vmul.f32 %v70, %v140
  %v195 = vmul.f32 %v71, %v140
  %v196 = vmul.f32 %v72, %v140
  %v197 = vadd.f32 %v81, %v141
  %v198 = vadd.f32 %v82, %v142
  %v199 = vadd.f32 %v83, %v143
  %v200 = vadd.f32 %v84, %v144
  %v201 = vadd.f32 %v85, %v145
  %v202 = vadd.f32 %v86, %v146
  %v203 = vadd.f32 %v87, %v147
  %v204 = vadd.f32 %v88, %v148
  %v205 = vadd.f32 %v89, %v149
  %v206 = vadd.f32 %v90, %v150
  %v207 = vadd.f32 %v91, %v151
  %v208 = vadd.f32 %v92, %v152
  %v209 = vadd.f32 %v93, %v153
  %v210 = vadd.f32 %v94, %v154
  %v211 = vadd.f32 %v95, %v155
  %v212 = vadd.f32 %v96, %v156
  %v213 = vadd.f32 %v97, %v157
  %v214 = vadd.f32 %v98, %v158
  %v215 = vadd.f32 %v99, %v159
  %v216 = vadd.f32 %v100, %v160
  %v217 = vadd.f32 %v101, %v161
  %v218 = vadd.f32 %v102, %v162
  %v219 = vadd.f32 %v103, %v163
  %v220 = vadd.f32 %v104, %v164
  %v221 = vadd.f32 %v105, %v165
  %v222 = vadd.f32 %v106, %v166
  %v223 = vadd.f32 %v107, %v167
  %v224 = vadd.f32 %v108, %v168
  %v225 = vadd.f32 %v109, %v169
  %v226 = vadd.f32 %v110, %v170
  %v227 = vadd.f32 %v111, %v171
  %v228 = vadd.f32 %v112, %v172
  %v229 = vadd.f32 %v113, %v173
  %v230 = vadd.f32 %v114, %v174
  %v231 = vadd.f32 %v115, %v175
  %v232 = vadd.f32 %v116, %v176
  %v233 = vadd.f32 %v117, %v177
  %v234 = vadd.f32 %v118, %v178
  %v235 = vadd.f32 %v119, %v179
  %v236 = vadd.f32 %v120, %v180
  %v237 = vadd.f32 %v121, %v181
  %v238 = vadd.f32 %v122, %v182
  %v239 = vadd.f32 %v123, %v183
  %v240 = vadd.f32 %v124, %v184
  %v241 = vadd.f32 %v125, %v185
  %v242 = vadd.f32 %v126, %v186
  %v243 = vadd.f32 %v127, %v187
  %v244 = vadd.f32 %v128, %v188
  %v245 = vadd.f32 %v129, %v189
  %v246 = vadd.f32 %v130, %v190
  %v247 = vadd.f32 %v131, %v191
  %v248 = vadd.f32 %v132, %v192
  %v249 = vadd.f32 %v133, %v193
  %v250 = vadd.f32 %v134, %v194
  %v251 = vadd.f32 %v135, %v195
  %v252 = vadd.f32 %v136, %v196
  %v253 = vlaneseq
  %v254 = vshrl.u32 %v253, 7
  %v255 = vsub.s32 2, %v254
  %v256 = vrot.slane %v75, %v255
  %v257 = vmul.f32 %v15, %v256
  %v258 = vmul.f32 %v16, %v256
  %v259 = vmul.f32 %v17, %v256
  %v260 = vmul.f32 %v18, %v256
  %v261 = vmul.f32 %v19, %v256
  %v262 = vmul.f32 %v20, %v256
  %v263 = vmul.f32 %v21, %v256
  %v264 = vmul.f32 %v22, %v256
  %v265 = vmul.f32 %v23, %v256
  %v266 = vmul.f32 %v24, %v256
  %v267 = vmul.f32 %v25, %v256
  %v268 = vmul.f32 %v26, %v256
  %v269 = vmul.f32 %v27, %v256
  %v270 = vmul.f32 %v28, %v256
  %v271 = vmul.f32 %v29, %v256
  %v272 = vmul.f32 %v30, %v256
  %v273 = vmul.f32 %v31, %v256
  %v274 = vmul.f32 %v32, %v256
  %v275 = vmul.f32 %v33, %v256
  %v276 = vmul.f32 %v34, %v256
  %v277 = vmul.f32 %v35, %v256
  %v278 = vmul.f32 %v36, %v256
  %v279 = vmul.f32 %v37, %v256
  %v280 = vmul.f32 %v38, %v256
  %v281 = vmul.f32 %v39, %v256
  %v282 = vmul.f32 %v40, %v256
  %v283 = vmul.f32 %v41, %v256
  %v284 = vmul.f32 %v42, %v256
  %v285 = vmul.f32 %v47, %v256
  %v286 = vmul.f32 %v48, %v256
  %v287 = vmul.f32 %v49, %v256
  %v288 = vmul.f32 %v50, %v256
  %v289 = vmul.f32 %v51, %v256
  %v290 = vmul.f32 %v52, %v256
  %v291 = vmul.f32 %v53, %v256
  %v292 = vmul.f32 %v54, %v256
  %v293 = vmul.f32 %v55, %v256
  %v294 = vmul.f32 %v56, %v256
  %v295 = vmul.f32 %v57, %v256
  %v296 = vmul.f32 %v58, %v256
  %v297 = vmul.f32 %v59, %v256
  %v298 = vmul.f32 %v60, %v256
  %v299 = vmul.f32 %v61, %v256
  %v300 = vmul.f32 %v62, %v256
  %v301 = vmul.f32 %v63, %v256
  %v302 = vmul.f32 %v64, %v256
  %v303 = vmul.f32 %v65, %v256
  %v304 = vmul.f32 %v66, %v256
  %v305 = vmul.f32 %v67, %v256
  %v306 = vmul.f32 %v68, %v256
  %v307 = vmul.f32 %v69, %v256
  %v308 = vmul.f32 %v70, %v256
  %v309 = vmul.f32 %v71, %v256
  %v310 = vmul.f32 %v72, %v256
  %v311 = vmul.f32 %v73, %v256
  %v312 = vmul.f32 %v74, %v256
  %v313 = vadd.f32 %v197, %v257
  %v314 = vadd.f32 %v198, %v258
  %v315 = vadd.f32 %v199, %v259
  %v316 = vadd.f32 %v200, %v260
  %v317 = vadd.f32 %v201, %v261
  %v318 = vadd.f32 %v202, %v262
  %v319 = vadd.f32 %v203, %v263
  %v320 = vadd.f32 %v204, %v264
  %v321 = vadd.f32 %v205, %v265
  %v322 = vadd.f32 %v206, %v266
  %v323 = vadd.f32 %v207, %v267
  %v324 = vadd.f32 %v208, %v268
  %v325 = vadd.f32 %v209, %v269
  %v326 = vadd.f32 %v210, %v270
  %v327 = vadd.f32 %v211, %v271
  %v328 = vadd.f32 %v212, %v272
  %v329 = vadd.f32 %v213, %v273
  %v330 = vadd.f32 %v214, %v274
  %v331 = vadd.f32 %v215, %v275
  %v332 = vadd.f32 %v216, %v276
  %v333 = vadd.f32 %v217, %v277
  %v334 = vadd.f32 %v218, %v278
  %v335 = vadd.f32 %v219, %v279
  %v336 = vadd.f32 %v220, %v280
  %v337 = vadd.f32 %v221, %v281
  %v338 = vadd.f32 %v222, %v282
  %v339 = vadd.f32 %v223, %v283
  %v340 = vadd.f32 %v224, %v284
  %v341 = vadd.f32 %v225, %v285
  %v342 = vadd.f32 %v226, %v286
  %v343 = vadd.f32 %v227, %v287
  %v344 = vadd.f32 %v228, %v288
  %v345 = vadd.f32 %v229, %v289
  %v346 = vadd.f32 %v230, %v290
  %v347 = vadd.f32 %v231, %v291
  %v348 = vadd.f32 %v232, %v292
  %v349 = vadd.f32 %v233, %v293
  %v350 = vadd.f32 %v234, %v294
  %v351 = vadd.f32 %v235, %v295
  %v352 = vadd.f32 %v236, %v296
  %v353 = vadd.f32 %v237, %v297
  %v354 = vadd.f32 %v238, %v298
  %v355 = vadd.f32 %v239, %v299
  %v356 = vadd.f32 %v240, %v300
  %v357 = vadd.f32 %v241, %v301
  %v358 = vadd.f32 %v242, %v302
  %v359 = vadd.f32 %v243, %v303
  %v360 = vadd.f32 %v244, %v304
  %v361 = vadd.f32 %v245, %v305
  %v362 = vadd.f32 %v246, %v306
  %v363 = vadd.f32 %v247, %v307
  %v364 = vadd.f32 %v248, %v308
  %v365 = vadd.f32 %v249, %v309
  %v366 = vadd.f32 %v250, %v310
  %v367 = vadd.f32 %v251, %v311
  %v368 = vadd.f32 %v252, %v312
  %vm369 = vcmask 31744
  %v370 = vsel %vm369, %v313, 0.0
  %v371 = vsel %vm369, %v314, 0.0
  %v372 = vadd.f32 %v370, %v371
  %v373 = vsel %vm369, %v315, 0.0
  %v374 = vadd.f32 %v372, %v373
  %v375 = vsel %vm369, %v316, 0.0
  %v376 = vadd.f32 %v374, %v375
  %v377 = vsel %vm369, %v317, 0.0
  %v378 = vadd.f32 %v376, %v377
  %v379 = vsel %vm369, %v318, 0.0
  %v380 = vadd.f32 %v378, %v379
  %v381 = vsel %vm369, %v319, 0.0
  %v382 = vadd.f32 %v380, %v381
  %v383 = vsel %vm369, %v320, 0.0
  %v384 = vadd.f32 %v382, %v383
  %v385 = vsel %vm369, %v321, 0.0
  %v386 = vadd.f32 %v384, %v385
  %v387 = vsel %vm369, %v322, 0.0
  %v388 = vadd.f32 %v386, %v387
  %v389 = vsel %vm369, %v323, 0.0
  %v390 = vadd.f32 %v388, %v389
  %v391 = vsel %vm369, %v324, 0.0
  %v392 = vadd.f32 %v390, %v391
  %v393 = vsel %vm369, %v325, 0.0
  %v394 = vadd.f32 %v392, %v393
  %v395 = vsel %vm369, %v326, 0.0
  %v396 = vadd.f32 %v394, %v395
  %v397 = vsel %vm369, %v327, 0.0
  %v398 = vadd.f32 %v396, %v397
  %v399 = vsel %vm369, %v328, 0.0
  %v400 = vadd.f32 %v398, %v399
  %v401 = vsel %vm369, %v329, 0.0
  %v402 = vadd.f32 %v400, %v401
  %v403 = vsel %vm369, %v330, 0.0
  %v404 = vadd.f32 %v402, %v403
  %v405 = vsel %vm369, %v331, 0.0
  %v406 = vadd.f32 %v404, %v405
  %v407 = vsel %vm369, %v332, 0.0
  %v408 = vadd.f32 %v406, %v407
  %v409 = vsel %vm369, %v333, 0.0
  %v410 = vadd.f32 %v408, %v409
  %v411 = vsel %vm369, %v334, 0.0
  %v412 = vadd.f32 %v410, %v411
  %v413 = vsel %vm369, %v335, 0.0
  %v414 = vadd.f32 %v412, %v413
  %v415 = vsel %vm369, %v336, 0.0
  %v416 = vadd.f32 %v414, %v415
  %v417 = vsel %vm369, %v337, 0.0
  %v418 = vadd.f32 %v416, %v417
  %v419 = vsel %vm369, %v338, 0.0
  %v420 = vadd.f32 %v418, %v419
  %v421 = vsel %vm369, %v339, 0.0
  %v422 = vadd.f32 %v420, %v421
  %v423 = vsel %vm369, %v340, 0.0
  %v424 = vadd.f32 %v422, %v423
  %v425 = vsel %vm369, %v341, 0.0
  %v426 = vadd.f32 %v424, %v425
  %v427 = vsel %vm369, %v342, 0.0
  %v428 = vadd.f32 %v426, %v427
  %v429 = vsel %vm369, %v343, 0.0
  %v430 = vadd.f32 %v428, %v429
  %v431 = vsel %vm369, %v344, 0.0
  %v432 = vadd.f32 %v430, %v431
  %v433 = vsel %vm369, %v345, 0.0
  %v434 = vadd.f32 %v432, %v433
  %v435 = vsel %vm369, %v346, 0.0
  %v436 = vadd.f32 %v434, %v435
  %v437 = vsel %vm369, %v347, 0.0
  %v438 = vadd.f32 %v436, %v437
  %v439 = vsel %vm369, %v348, 0.0
  %v440 = vadd.f32 %v438, %v439
  %v441 = vsel %vm369, %v349, 0.0
  %v442 = vadd.f32 %v440, %v441
  %v443 = vsel %vm369, %v350, 0.0
  %v444 = vadd.f32 %v442, %v443
  %v445 = vsel %vm369, %v351, 0.0
  %v446 = vadd.f32 %v444, %v445
  %v447 = vsel %vm369, %v352, 0.0
  %v448 = vadd.f32 %v446, %v447
  %v449 = vsel %vm369, %v353, 0.0
  %v450 = vadd.f32 %v448, %v449
  %v451 = vsel %vm369, %v354, 0.0
  %v452 = vadd.f32 %v450, %v451
  %v453 = vsel %vm369, %v355, 0.0
  %v454 = vadd.f32 %v452, %v453
  %v455 = vsel %vm369, %v356, 0.0
  %v456 = vadd.f32 %v454, %v455
  %v457 = vsel %vm369, %v357, 0.0
  %v458 = vadd.f32 %v456, %v457
  %v459 = vsel %vm369, %v358, 0.0
  %v460 = vadd.f32 %v458, %v459
  %v461 = vsel %vm369, %v359, 0.0
  %v462 = vadd.f32 %v460, %v461
  %v463 = vsel %vm369, %v360, 0.0
  %v464 = vadd.f32 %v462, %v463
  %v465 = vsel %vm369, %v361, 0.0
  %v466 = vadd.f32 %v464, %v465
  %v467 = vsel %vm369, %v362, 0.0
  %v468 = vadd.f32 %v466, %v467
  %v469 = vsel %vm369, %v363, 0.0
  %v470 = vadd.f32 %v468, %v469
  %v471 = vsel %vm369, %v364, 0.0
  %v472 = vadd.f32 %v470, %v471
  %v473 = vsel %vm369, %v365, 0.0
  %v474 = vadd.f32 %v472, %v473
  %v475 = vsel %vm369, %v366, 0.0
  %v476 = vadd.f32 %v474, %v475
  %v477 = vsel %vm369, %v367, 0.0
  %v478 = vadd.f32 %v476, %v477
  %v479 = vsel %vm369, %v368, 0.0
  %v480 = vadd.f32 %v478, %v479
  %v481 = vrot.slane %v480, 4
  %v482 = vadd.f32 %v480, %v481
  %v483 = vrot.slane %v482, 2
  %v484 = vadd.f32 %v482, %v483
  %v485 = vrot.slane %v484, 1
  %v486 = vadd.f32 %v484, %v485
  %v487 = vmul.f32 %v486, 0.002232143
  %v488 = vsub.f32 %v313, %v487
  %v489 = vsub.f32 %v314, %v487
  %v490 = vsub.f32 %v315, %v487
  %v491 = vsub.f32 %v316, %v487
  %v492 = vsub.f32 %v317, %v487
  %v493 = vsub.f32 %v318, %v487
  %v494 = vsub.f32 %v319, %v487
  %v495 = vsub.f32 %v320, %v487
  %v496 = vsub.f32 %v321, %v487
  %v497 = vsub.f32 %v322, %v487
  %v498 = vsub.f32 %v323, %v487
  %v499 = vsub.f32 %v324, %v487
  %v500 = vsub.f32 %v325, %v487
  %v501 = vsub.f32 %v326, %v487
  %v502 = vsub.f32 %v327, %v487
  %v503 = vsub.f32 %v328, %v487
  %v504 = vsub.f32 %v329, %v487
  %v505 = vsub.f32 %v330, %v487
  %v506 = vsub.f32 %v331, %v487
  %v507 = vsub.f32 %v332, %v487
  %v508 = vsub.f32 %v333, %v487
  %v509 = vsub.f32 %v334, %v487
  %v510 = vsub.f32 %v335, %v487
  %v511 = vsub.f32 %v336, %v487
  %v512 = vsub.f32 %v337, %v487
  %v513 = vsub.f32 %v338, %v487
  %v514 = vsub.f32 %v339, %v487
  %v515 = vsub.f32 %v340, %v487
  %v516 = vsub.f32 %v341, %v487
  %v517 = vsub.f32 %v342, %v487
  %v518 = vsub.f32 %v343, %v487
  %v519 = vsub.f32 %v344, %v487
  %v520 = vsub.f32 %v345, %v487
  %v521 = vsub.f32 %v346, %v487
  %v522 = vsub.f32 %v347, %v487
  %v523 = vsub.f32 %v348, %v487
  %v524 = vsub.f32 %v349, %v487
  %v525 = vsub.f32 %v350, %v487
  %v526 = vsub.f32 %v351, %v487
  %v527 = vsub.f32 %v352, %v487
  %v528 = vsub.f32 %v353, %v487
  %v529 = vsub.f32 %v354, %v487
  %v530 = vsub.f32 %v355, %v487
  %v531 = vsub.f32 %v356, %v487
  %v532 = vsub.f32 %v357, %v487
  %v533 = vsub.f32 %v358, %v487
  %v534 = vsub.f32 %v359, %v487
  %v535 = vsub.f32 %v360, %v487
  %v536 = vsub.f32 %v361, %v487
  %v537 = vsub.f32 %v362, %v487
  %v538 = vsub.f32 %v363, %v487
  %v539 = vsub.f32 %v364, %v487
  %v540 = vsub.f32 %v365, %v487
  %v541 = vsub.f32 %v366, %v487
  %v542 = vsub.f32 %v367, %v487
  %v543 = vsub.f32 %v368, %v487
  %v544 = vmul.f32 %v488, %v488
  %v545 = vmul.f32 %v489, %v489
  %v546 = vmul.f32 %v490, %v490
  %v547 = vmul.f32 %v491, %v491
  %v548 = vmul.f32 %v492, %v492
  %v549 = vmul.f32 %v493, %v493
  %v550 = vmul.f32 %v494, %v494
  %v551 = vmul.f32 %v495, %v495
  %v552 = vmul.f32 %v496, %v496
  %v553 = vmul.f32 %v497, %v497
  %v554 = vmul.f32 %v498, %v498
  %v555 = vmul.f32 %v499, %v499
  %v556 = vmul.f32 %v500, %v500
  %v557 = vmul.f32 %v501, %v501
  %v558 = vmul.f32 %v502, %v502
  %v559 = vmul.f32 %v503, %v503
  %v560 = vmul.f32 %v504, %v504
  %v561 = vmul.f32 %v505, %v505
  %v562 = vmul.f32 %v506, %v506
  %v563 = vmul.f32 %v507, %v507
  %v564 = vmul.f32 %v508, %v508
  %v565 = vmul.f32 %v509, %v509
  %v566 = vmul.f32 %v510, %v510
  %v567 = vmul.f32 %v511, %v511
  %v568 = vmul.f32 %v512, %v512
  %v569 = vmul.f32 %v513, %v513
  %v570 = vmul.f32 %v514, %v514
  %v571 = vmul.f32 %v515, %v515
  %v572 = vmul.f32 %v516, %v516
  %v573 = vmul.f32 %v517, %v517
  %v574 = vmul.f32 %v518, %v518
  %v575 = vmul.f32 %v519, %v519
  %v576 = vmul.f32 %v520, %v520
  %v577 = vmul.f32 %v521, %v521
  %v578 = vmul.f32 %v522, %v522
  %v579 = vmul.f32 %v523, %v523
  %v580 = vmul.f32 %v524, %v524
  %v581 = vmul.f32 %v525, %v525
  %v582 = vmul.f32 %v526, %v526
  %v583 = vmul.f32 %v527, %v527
  %v584 = vmul.f32 %v528, %v528
  %v585 = vmul.f32 %v529, %v529
  %v586 = vmul.f32 %v530, %v530
  %v587 = vmul.f32 %v531, %v531
  %v588 = vmul.f32 %v532, %v532
  %v589 = vmul.f32 %v533, %v533
  %v590 = vmul.f32 %v534, %v534
  %v591 = vmul.f32 %v535, %v535
  %v592 = vmul.f32 %v536, %v536
  %v593 = vmul.f32 %v537, %v537
  %v594 = vmul.f32 %v538, %v538
  %v595 = vmul.f32 %v539, %v539
  %v596 = vmul.f32 %v540, %v540
  %v597 = vmul.f32 %v541, %v541
  %v598 = vmul.f32 %v542, %v542
  %v599 = vmul.f32 %v543, %v543
  %v600 = vsel %vm369, %v544, 0.0
  %v601 = vsel %vm369, %v545, 0.0
  %v602 = vadd.f32 %v600, %v601
  %v603 = vsel %vm369, %v546, 0.0
  %v604 = vadd.f32 %v602, %v603
  %v605 = vsel %vm369, %v547, 0.0
  %v606 = vadd.f32 %v604, %v605
  %v607 = vsel %vm369, %v548, 0.0
  %v608 = vadd.f32 %v606, %v607
  %v609 = vsel %vm369, %v549, 0.0
  %v610 = vadd.f32 %v608, %v609
  %v611 = vsel %vm369, %v550, 0.0
  %v612 = vadd.f32 %v610, %v611
  %v613 = vsel %vm369, %v551, 0.0
  %v614 = vadd.f32 %v612, %v613
  %v615 = vsel %vm369, %v552, 0.0
  %v616 = vadd.f32 %v614, %v615
  %v617 = vsel %vm369, %v553, 0.0
  %v618 = vadd.f32 %v616, %v617
  %v619 = vsel %vm369, %v554, 0.0
  %v620 = vadd.f32 %v618, %v619
  %v621 = vsel %vm369, %v555, 0.0
  %v622 = vadd.f32 %v620, %v621
  %v623 = vsel %vm369, %v556, 0.0
  %v624 = vadd.f32 %v622, %v623
  %v625 = vsel %vm369, %v557, 0.0
  %v626 = vadd.f32 %v624, %v625
  %v627 = vsel %vm369, %v558, 0.0
  %v628 = vadd.f32 %v626, %v627
  %v629 = vsel %vm369, %v559, 0.0
  %v630 = vadd.f32 %v628, %v629
  %v631 = vsel %vm369, %v560, 0.0
  %v632 = vadd.f32 %v630, %v631
  %v633 = vsel %vm369, %v561, 0.0
  %v634 = vadd.f32 %v632, %v633
  %v635 = vsel %vm369, %v562, 0.0
  %v636 = vadd.f32 %v634, %v635
  %v637 = vsel %vm369, %v563, 0.0
  %v638 = vadd.f32 %v636, %v637
  %v639 = vsel %vm369, %v564, 0.0
  %v640 = vadd.f32 %v638, %v639
  %v641 = vsel %vm369, %v565, 0.0
  %v642 = vadd.f32 %v640, %v641
  %v643 = vsel %vm369, %v566, 0.0
  %v644 = vadd.f32 %v642, %v643
  %v645 = vsel %vm369, %v567, 0.0
  %v646 = vadd.f32 %v644, %v645
  %v647 = vsel %vm369, %v568, 0.0
  %v648 = vadd.f32 %v646, %v647
  %v649 = vsel %vm369, %v569, 0.0
  %v650 = vadd.f32 %v648, %v649
  %v651 = vsel %vm369, %v570, 0.0
  %v652 = vadd.f32 %v650, %v651
  %v653 = vsel %vm369, %v571, 0.0
  %v654 = vadd.f32 %v652, %v653
  %v655 = vsel %vm369, %v572, 0.0
  %v656 = vadd.f32 %v654, %v655
  %v657 = vsel %vm369, %v573, 0.0
  %v658 = vadd.f32 %v656, %v657
  %v659 = vsel %vm369, %v574, 0.0
  %v660 = vadd.f32 %v658, %v659
  %v661 = vsel %vm369, %v575, 0.0
  %v662 = vadd.f32 %v660, %v661
  %v663 = vsel %vm369, %v576, 0.0
  %v664 = vadd.f32 %v662, %v663
  %v665 = vsel %vm369, %v577, 0.0
  %v666 = vadd.f32 %v664, %v665
  %v667 = vsel %vm369, %v578, 0.0
  %v668 = vadd.f32 %v666, %v667
  %v669 = vsel %vm369, %v579, 0.0
  %v670 = vadd.f32 %v668, %v669
  %v671 = vsel %vm369, %v580, 0.0
  %v672 = vadd.f32 %v670, %v671
  %v673 = vsel %vm369, %v581, 0.0
  %v674 = vadd.f32 %v672, %v673
  %v675 = vsel %vm369, %v582, 0.0
  %v676 = vadd.f32 %v674, %v675
  %v677 = vsel %vm369, %v583, 0.0
  %v678 = vadd.f32 %v676, %v677
  %v679 = vsel %vm369, %v584, 0.0
  %v680 = vadd.f32 %v678, %v679
  %v681 = vsel %vm369, %v585, 0.0
  %v682 = vadd.f32 %v680, %v681
  %v683 = vsel %vm369, %v586, 0.0
  %v684 = vadd.f32 %v682, %v683
  %v685 = vsel %vm369, %v587, 0.0
  %v686 = vadd.f32 %v684, %v685
  %v687 = vsel %vm369, %v588, 0.0
  %v688 = vadd.f32 %v686, %v687
  %v689 = vsel %vm369, %v589, 0.0
  %v690 = vadd.f32 %v688, %v689
  %v691 = vsel %vm369, %v590, 0.0
  %v692 = vadd.f32 %v690, %v691
  %v693 = vsel %vm369, %v591, 0.0
  %v694 = vadd.f32 %v692, %v693
  %v695 = vsel %vm369, %v592, 0.0
  %v696 = vadd.f32 %v694, %v695
  %v697 = vsel %vm369, %v593, 0.0
  %v698 = vadd.f32 %v696, %v697
  %v699 = vsel %vm369, %v594, 0.0
  %v700 = vadd.f32 %v698, %v699
  %v701 = vsel %vm369, %v595, 0.0
  %v702 = vadd.f32 %v700, %v701
  %v703 = vsel %vm369, %v596, 0.0
  %v704 = vadd.f32 %v702, %v703
  %v705 = vsel %vm369, %v597, 0.0
  %v706 = vadd.f32 %v704, %v705
  %v707 = vsel %vm369, %v598, 0.0
  %v708 = vadd.f32 %v706, %v707
  %v709 = vsel %vm369, %v599, 0.0
  %v710 = vadd.f32 %v708, %v709
  %v711 = vrot.slane %v710, 4
  %v712 = vadd.f32 %v710, %v711
  %v713 = vrot.slane %v712, 2
  %v714 = vadd.f32 %v712, %v713
  %v715 = vrot.slane %v714, 1
  %v716 = vadd.f32 %v714, %v715
  %v717 = vmul.f32 %v716, 0.002232143
  %v718 = vadd.f32 %v717, 1e-05
  %v719 = vrsqrt.pop %v718
  %v720 = vmul.f32 %v75, %v719
  %v721 = vlaneseq
  %v722 = vshrl.u32 %v721, 7
  %v723 = vsub.s32 6, %v722
  %v724 = vrot.slane %v720, %v723
  %v725 = vmul.f32 %v488, %v724
  %v726 = vmul.f32 %v489, %v724
  %v727 = vmul.f32 %v490, %v724
  %v728 = vmul.f32 %v491, %v724
  %v729 = vmul.f32 %v492, %v724
  %v730 = vmul.f32 %v493, %v724
  %v731 = vmul.f32 %v494, %v724
  %v732 = vmul.f32 %v495, %v724
  %v733 = vmul.f32 %v496, %v724
  %v734 = vmul.f32 %v497, %v724
  %v735 = vmul.f32 %v498, %v724
  %v736 = vmul.f32 %v499, %v724
  %v737 = vmul.f32 %v500, %v724
  %v738 = vmul.f32 %v501, %v724
  %v739 = vmul.f32 %v502, %v724
  %v740 = vmul.f32 %v503, %v724
  %v741 = vmul.f32 %v504, %v724
  %v742 = vmul.f32 %v505, %v724
  %v743 = vmul.f32 %v506, %v724
  %v744 = vmul.f32 %v507, %v724
  %v745 = vmul.f32 %v508, %v724
  %v746 = vmul.f32 %v509, %v724
  %v747 = vmul.f32 %v510, %v724
  %v748 = vmul.f32 %v511, %v724
  %v749 = vmul.f32 %v512, %v724
  %v750 = vmul.f32 %v513, %v724
  %v751 = vmul.f32 %v514, %v724
  %v752 = vmul.f32 %v515, %v724
  %v753 = vmul.f32 %v516, %v724
  %v754 = vmul.f32 %v517, %v724
  %v755 = vmul.f32 %v518, %v724
  %v756 = vmul.f32 %v519, %v724
  %v757 = vmul.f32 %v520, %v724
  %v758 = vmul.f32 %v521, %v724
  %v759 = vmul.f32 %v522, %v724
  %v760 = vmul.f32 %v523, %v724
  %v761 = vmul.f32 %v524, %v724
  %v762 = vmul.f32 %v525, %v724
  %v763 = vmul.f32 %v526, %v724
  %v764 = vmul.f32 %v527, %v724
  %v765 = vmul.f32 %v528, %v724
  %v766 = vmul.f32 %v529, %v724
  %v767 = vmul.f32 %v530, %v724
  %v768 = vmul.f32 %v531, %v724
  %v769 = vmul.f32 %v532, %v724
  %v770 = vmul.f32 %v533, %v724
  %v771 = vmul.f32 %v534, %v724
  %v772 = vmul.f32 %v535, %v724
  %v773 = vmul.f32 %v536, %v724
  %v774 = vmul.f32 %v537, %v724
  %v775 = vmul.f32 %v538, %v724
  %v776 = vmul.f32 %v539, %v724
  %v777 = vmul.f32 %v540, %v724
  %v778 = vmul.f32 %v541, %v724
  %v779 = vmul.f32 %v542, %v724
  %v780 = vmul.f32 %v543, %v724
  %v781 = vlaneseq
  %v782 = vshrl.u32 %v781, 7
  %v783 = vsub.s32 7, %v782
  %v784 = vrot.slane %v75, %v783
  %v785 = vadd.f32 %v725, %v784
  %v786 = vadd.f32 %v726, %v784
  %v787 = vadd.f32 %v727, %v784
  %v788 = vadd.f32 %v728, %v784
  %v789 = vadd.f32 %v729, %v784
  %v790 = vadd.f32 %v730, %v784
  %v791 = vadd.f32 %v731, %v784
  %v792 = vadd.f32 %v732, %v784
  %v793 = vadd.f32 %v733, %v784
  %v794 = vadd.f32 %v734, %v784
  %v795 = vadd.f32 %v735, %v784
  %v796 = vadd.f32 %v736, %v784
  %v797 = vadd.f32 %v737, %v784
  %v798 = vadd.f32 %v738, %v784
  %v799 = vadd.f32 %v739, %v784
  %v800 = vadd.f32 %v740, %v784
  %v801 = vadd.f32 %v741, %v784
  %v802 = vadd.f32 %v742, %v784
  %v803 = vadd.f32 %v743, %v784
  %v804 = vadd.f32 %v744, %v784
  %v805 = vadd.f32 %v745, %v784
  %v806 = vadd.f32 %v746, %v784
  %v807 = vadd.f32 %v747, %v784
  %v808 = vadd.f32 %v748, %v784
  %v809 = vadd.f32 %v749, %v784
  %v810 = vadd.f32 %v750, %v784
  %v811 = vadd.f32 %v751, %v784
  %v812 = vadd.f32 %v752, %v784
  %v813 = vadd.f32 %v753, %v784
  %v814 = vadd.f32 %v754, %v784
  %v815 = vadd.f32 %v755, %v784
  %v816 = vadd.f32 %v756, %v784
  %v817 = vadd.f32 %v757, %v784
  %v818 = vadd.f32 %v758, %v784
  %v819 = vadd.f32 %v759, %v784
  %v820 = vadd.f32 %v760, %v784
  %v821 = vadd.f32 %v761, %v784
  %v822 = vadd.f32 %v762, %v784
  %v823 = vadd.f32 %v763, %v784
  %v824 = vadd.f32 %v764, %v784
  %v825 = vadd.f32 %v765, %v784
  %v826 = vadd.f32 %v766, %v784
  %v827 = vadd.f32 %v767, %v784
  %v828 = vadd.f32 %v768, %v784
  %v829 = vadd.f32 %v769, %v784
  %v830 = vadd.f32 %v770, %v784
  %v831 = vadd.f32 %v771, %v784
  %v832 = vadd.f32 %v772, %v784
  %v833 = vadd.f32 %v773, %v784
  %v834 = vadd.f32 %v774, %v784
  %v835 = vadd.f32 %v775, %v784
  %v836 = vadd.f32 %v776, %v784
  %v837 = vadd.f32 %v777, %v784
  %v838 = vadd.f32 %v778, %v784
  %v839 = vadd.f32 %v779, %v784
  %v840 = vadd.f32 %v780, %v784
  %v841 = vmax.f32 %v785, 0.0
  %v842 = vmax.f32 %v786, 0.0
  %v843 = vmax.f32 %v787, 0.0
  %v844 = vmax.f32 %v788, 0.0
  %v845 = vmax.f32 %v789, 0.0
  %v846 = vmax.f32 %v790, 0.0
  %v847 = vmax.f32 %v791, 0.0
  %v848 = vmax.f32 %v792, 0.0
  %v849 = vmax.f32 %v793, 0.0
  %v850 = vmax.f32 %v794, 0.0
  %v851 = vmax.f32 %v795, 0.0
  %v852 = vmax.f32 %v796, 0.0
  %v853 = vmax.f32 %v797, 0.0
  %v854 = vmax.f32 %v798, 0.0
  %v855 = vmax.f32 %v799, 0.0
  %v856 = vmax.f32 %v800, 0.0
  %v857 = vmax.f32 %v801, 0.0
  %v858 = vmax.f32 %v802, 0.0
  %v859 = vmax.f32 %v803, 0.0
  %v860 = vmax.f32 %v804, 0.0
  %v861 = vmax.f32 %v805, 0.0
  %v862 = vmax.f32 %v806, 0.0
  %v863 = vmax.f32 %v807, 0.0
  %v864 = vmax.f32 %v808, 0.0
  %v865 = vmax.f32 %v809, 0.0
  %v866 = vmax.f32 %v810, 0.0
  %v867 = vmax.f32 %v811, 0.0
  %v868 = vmax.f32 %v812, 0.0
  %v869 = vmax.f32 %v813, 0.0
  %v870 = vmax.f32 %v814, 0.0
  %v871 = vmax.f32 %v815, 0.0
  %v872 = vmax.f32 %v816, 0.0
  %v873 = vmax.f32 %v817, 0.0
  %v874 = vmax.f32 %v818, 0.0
  %v875 = vmax.f32 %v819, 0.0
  %v876 = vmax.f32 %v820, 0.0
  %v877 = vmax.f32 %v821, 0.0
  %v878 = vmax.f32 %v822, 0.0
  %v879 = vmax.f32 %v823, 0.0
  %v880 = vmax.f32 %v824, 0.0
  %v881 = vmax.f32 %v825, 0.0
  %v882 = vmax.f32 %v826, 0.0
  %v883 = vmax.f32 %v827, 0.0
  %v884 = vmax.f32 %v828, 0.0
  %v885 = vmax.f32 %v829, 0.0
  %v886 = vmax.f32 %v830, 0.0
  %v887 = vmax.f32 %v831, 0.0
  %v888 = vmax.f32 %v832, 0.0
  %v889 = vmax.f32 %v833, 0.0
  %v890 = vmax.f32 %v834, 0.0
  %v891 = vmax.f32 %v835, 0.0
  %v892 = vmax.f32 %v836, 0.0
  %v893 = vmax.f32 %v837, 0.0
  %v894 = vmax.f32 %v838, 0.0
  %v895 = vmax.f32 %v839, 0.0
  %v896 = vmax.f32 %v840, 0.0
  %v897 = vlaneseq
  %v898 = vshrl.u32 %v897, 7
  %v899 = vsub.s32 3, %v898
  %v900 = vrot.slane %v75, %v899
  %v901 = vmul.f32 %v841, %v900
  %v902 = vmul.f32 %v842, %v900
  %v903 = vmul.f32 %v843, %v900
  %v904 = vmul.f32 %v844, %v900
  %v905 = vmul.f32 %v845, %v900
  %v906 = vmul.f32 %v846, %v900
  %v907 = vmul.f32 %v847, %v900
  %v908 = vmul.f32 %v848, %v900
  %v909 = vmul.f32 %v849, %v900
  %v910 = vmul.f32 %v850, %v900
  %v911 = vmul.f32 %v851, %v900
  %v912 = vmul.f32 %v852, %v900
  %v913 = vmul.f32 %v853, %v900
  %v914 = vmul.f32 %v854, %v900
  %v915 = vmul.f32 %v855, %v900
  %v916 = vmul.f32 %v856, %v900
  %v917 = vmul.f32 %v857, %v900
  %v918 = vmul.f32 %v858, %v900
  %v919 = vmul.f32 %v859, %v900
  %v920 = vmul.f32 %v860, %v900
  %v921 = vmul.f32 %v861, %v900
  %v922 = vmul.f32 %v862, %v900
  %v923 = vmul.f32 %v863, %v900
  %v924 = vmul.f32 %v864, %v900
  %v925 = vmul.f32 %v865, %v900
  %v926 = vmul.f32 %v866, %v900
  %v927 = vmul.f32 %v867, %v900
  %v928 = vmul.f32 %v868, %v900
  %v929 = vmul.f32 %v869, %v900
  %v930 = vmul.f32 %v870, %v900
  %v931 = vmul.f32 %v871, %v900
  %v932 = vmul.f32 %v872, %v900
  %v933 = vmul.f32 %v873, %v900
  %v934 = vmul.f32 %v874, %v900
  %v935 = vmul.f32 %v875, %v900
  %v936 = vmul.f32 %v876, %v900
  %v937 = vmul.f32 %v877, %v900
  %v938 = vmul.f32 %v878, %v900
  %v939 = vmul.f32 %v879, %v900
  %v940 = vmul.f32 %v880, %v900
  %v941 = vmul.f32 %v881, %v900
  %v942 = vmul.f32 %v882, %v900
  %v943 = vmul.f32 %v883, %v900
  %v944 = vmul.f32 %v884, %v900
  %v945 = vmul.f32 %v885, %v900
  %v946 = vmul.f32 %v886, %v900
  %v947 = vmul.f32 %v887, %v900
  %v948 = vmul.f32 %v888, %v900
  %v949 = vmul.f32 %v889, %v900
  %v950 = vmul.f32 %v890, %v900
  %v951 = vmul.f32 %v891, %v900
  %v952 = vmul.f32 %v892, %v900
  %v953 = vmul.f32 %v893, %v900
  %v954 = vmul.f32 %v894, %v900
  %v955 = vmul.f32 %v895, %v900
  %v956 = vmul.f32 %v896, %v900
  %v957 = vlaneseq
  %v958 = vshrl.u32 %v957, 7
  %v959 = vsub.s32 4, %v958
  %v960 = vrot.slane %v75, %v959
  %v961 = vmul.f32 %v841, %v960
  %v962 = vmul.f32 %v842, %v960
  %v963 = vmul.f32 %v843, %v960
  %v964 = vmul.f32 %v844, %v960
  %v965 = vmul.f32 %v845, %v960
  %v966 = vmul.f32 %v846, %v960
  %v967 = vmul.f32 %v847, %v960
  %v968 = vmul.f32 %v848, %v960
  %v969 = vmul.f32 %v849, %v960
  %v970 = vmul.f32 %v850, %v960
  %v971 = vmul.f32 %v851, %v960
  %v972 = vmul.f32 %v852, %v960
  %v973 = vmul.f32 %v853, %v960
  %v974 = vmul.f32 %v854, %v960
  %v975 = vmul.f32 %v855, %v960
  %v976 = vmul.f32 %v856, %v960
  %v977 = vmul.f32 %v857, %v960
  %v978 = vmul.f32 %v858, %v960
  %v979 = vmul.f32 %v859, %v960
  %v980 = vmul.f32 %v860, %v960
  %v981 = vmul.f32 %v861, %v960
  %v982 = vmul.f32 %v862, %v960
  %v983 = vmul.f32 %v863, %v960
  %v984 = vmul.f32 %v864, %v960
  %v985 = vmul.f32 %v865, %v960
  %v986 = vmul.f32 %v866, %v960
  %v987 = vmul.f32 %v867, %v960
  %v988 = vmul.f32 %v868, %v960
  %v989 = vmul.f32 %v869, %v960
  %v990 = vmul.f32 %v870, %v960
  %v991 = vmul.f32 %v871, %v960
  %v992 = vmul.f32 %v872, %v960
  %v993 = vmul.f32 %v873, %v960
  %v994 = vmul.f32 %v874, %v960
  %v995 = vmul.f32 %v875, %v960
  %v996 = vmul.f32 %v876, %v960
  %v997 = vmul.f32 %v877, %v960
  %v998 = vmul.f32 %v878, %v960
  %v999 = vmul.f32 %v879, %v960
  %v1000 = vmul.f32 %v880, %v960
  %v1001 = vmul.f32 %v881, %v960
  %v1002 = vmul.f32 %v882, %v960
  %v1003 = vmul.f32 %v883, %v960
  %v1004 = vmul.f32 %v884, %v960
  %v1005 = vmul.f32 %v885, %v960
  %v1006 = vmul.f32 %v886, %v960
  %v1007 = vmul.f32 %v887, %v960
  %v1008 = vmul.f32 %v888, %v960
  %v1009 = vmul.f32 %v889, %v960
  %v1010 = vmul.f32 %v890, %v960
  %v1011 = vmul.f32 %v891, %v960
  %v1012 = vmul.f32 %v892, %v960
  %v1013 = vmul.f32 %v893, %v960
  %v1014 = vmul.f32 %v894, %v960
  %v1015 = vmul.f32 %v895, %v960
  %v1016 = vmul.f32 %v896, %v960
  %vm1073 = vcmask 1046528
  %v1074 = vrot.slane %v961, 1
  %v1075 = vrot.slane %v962, 1
  %v1076 = vsel %vm1073, %v1074, %v1075
  %v1077 = vrot.slane %v963, 1
  %v1078 = vrot.slane %v964, 1
  %v1079 = vsel %vm1073, %v1077, %v1078
  %v1080 = vrot.slane %v965, 1
  %v1081 = vrot.slane %v966, 1
  %v1082 = vsel %vm1073, %v1080, %v1081
  %v1083 = vrot.slane %v967, 1
  %v1084 = vrot.slane %v968, 1
  %v1085 = vsel %vm1073, %v1083, %v1084
  %v1086 = vrot.slane %v969, 1
  %v1087 = vrot.slane %v970, 1
  %v1088 = vsel %vm1073, %v1086, %v1087
  %v1089 = vrot.slane %v971, 1
  %v1090 = vrot.slane %v972, 1
  %v1091 = vsel %vm1073, %v1089, %v1090
  %v1092 = vrot.slane %v973, 1
  %v1093 = vrot.slane %v974, 1
  %v1094 = vsel %vm1073, %v1092, %v1093
  %v1095 = vrot.slane %v975, 1
  %v1096 = vrot.slane %v976, 1
  %v1097 = vsel %vm1073, %v1095, %v1096
  %v1098 = vrot.slane %v977, 1
  %v1099 = vrot.slane %v978, 1
  %v1100 = vsel %vm1073, %v1098, %v1099
  %v1101 = vrot.slane %v979, 1
  %v1102 = vrot.slane %v980, 1
  %v1103 = vsel %vm1073, %v1101, %v1102
  %v1104 = vrot.slane %v981, 1
  %v1105 = vrot.slane %v982, 1
  %v1106 = vsel %vm1073, %v1104, %v1105
  %v1107 = vrot.slane %v983, 1
  %v1108 = vrot.slane %v984, 1
  %v1109 = vsel %vm1073, %v1107, %v1108
  %v1110 = vrot.slane %v985, 1
  %v1111 = vrot.slane %v986, 1
  %v1112 = vsel %vm1073, %v1110, %v1111
  %v1113 = vrot.slane %v987, 1
  %v1114 = vrot.slane %v988, 1
  %v1115 = vsel %vm1073, %v1113, %v1114
  %v1116 = vrot.slane %v989, 1
  %v1117 = vrot.slane %v990, 1
  %v1118 = vsel %vm1073, %v1116, %v1117
  %v1119 = vrot.slane %v991, 1
  %v1120 = vrot.slane %v992, 1
  %v1121 = vsel %vm1073, %v1119, %v1120
  %v1122 = vrot.slane %v993, 1
  %v1123 = vrot.slane %v994, 1
  %v1124 = vsel %vm1073, %v1122, %v1123
  %v1125 = vrot.slane %v995, 1
  %v1126 = vrot.slane %v996, 1
  %v1127 = vsel %vm1073, %v1125, %v1126
  %v1128 = vrot.slane %v997, 1
  %v1129 = vrot.slane %v998, 1
  %v1130 = vsel %vm1073, %v1128, %v1129
  %v1131 = vrot.slane %v999, 1
  %v1132 = vrot.slane %v1000, 1
  %v1133 = vsel %vm1073, %v1131, %v1132
  %v1134 = vrot.slane %v1001, 1
  %v1135 = vrot.slane %v1002, 1
  %v1136 = vsel %vm1073, %v1134, %v1135
  %v1137 = vrot.slane %v1003, 1
  %v1138 = vrot.slane %v1004, 1
  %v1139 = vsel %vm1073, %v1137, %v1138
  %v1140 = vrot.slane %v1005, 1
  %v1141 = vrot.slane %v1006, 1
  %v1142 = vsel %vm1073, %v1140, %v1141
  %v1143 = vrot.slane %v1007, 1
  %v1144 = vrot.slane %v1008, 1
  %v1145 = vsel %vm1073, %v1143, %v1144
  %v1146 = vrot.slane %v1009, 1
  %v1147 = vrot.slane %v1010, 1
  %v1148 = vsel %vm1073, %v1146, %v1147
  %v1149 = vrot.slane %v1011, 1
  %v1150 = vrot.slane %v1012, 1
  %v1151 = vsel %vm1073, %v1149, %v1150
  %v1152 = vrot.slane %v1013, 1
  %v1153 = vrot.slane %v1014, 1
  %v1154 = vsel %vm1073, %v1152, %v1153
  %v1155 = vrot.slane %v1015, 1
  %v1156 = vrot.slane %v1016, 1
  %v1157 = vsel %vm1073, %v1155, %v1156
  %v1214 = vadd.f32 %v901, %v1076
  %v1215 = vadd.f32 %v902, %v1075
  %v1216 = vadd.f32 %v903, %v1079
  %v1217 = vadd.f32 %v904, %v1078
  %v1218 = vadd.f32 %v905, %v1082
  %v1219 = vadd.f32 %v906, %v1081
  %v1220 = vadd.f32 %v907, %v1085
  %v1221 = vadd.f32 %v908, %v1084
  %v1222 = vadd.f32 %v909, %v1088
  %v1223 = vadd.f32 %v910, %v1087
  %v1224 = vadd.f32 %v911, %v1091
  %v1225 = vadd.f32 %v912, %v1090
  %v1226 = vadd.f32 %v913, %v1094
  %v1227 = vadd.f32 %v914, %v1093
  %v1228 = vadd.f32 %v915, %v1097
  %v1229 = vadd.f32 %v916, %v1096
  %v1230 = vadd.f32 %v917, %v1100
  %v1231 = vadd.f32 %v918, %v1099
  %v1232 = vadd.f32 %v919, %v1103
  %v1233 = vadd.f32 %v920, %v1102
  %v1234 = vadd.f32 %v921, %v1106
  %v1235 = vadd.f32 %v922, %v1105
  %v1236 = vadd.f32 %v923, %v1109
  %v1237 = vadd.f32 %v924, %v1108
  %v1238 = vadd.f32 %v925, %v1112
  %v1239 = vadd.f32 %v926, %v1111
  %v1240 = vadd.f32 %v927, %v1115
  %v1241 = vadd.f32 %v928, %v1114
  %v1242 = vadd.f32 %v929, %v1118
  %v1243 = vadd.f32 %v930, %v1117
  %v1244 = vadd.f32 %v931, %v1121
  %v1245 = vadd.f32 %v932, %v1120
  %v1246 = vadd.f32 %v933, %v1124
  %v1247 = vadd.f32 %v934, %v1123
  %v1248 = vadd.f32 %v935, %v1127
  %v1249 = vadd.f32 %v936, %v1126
  %v1250 = vadd.f32 %v937, %v1130
  %v1251 = vadd.f32 %v938, %v1129
  %v1252 = vadd.f32 %v939, %v1133
  %v1253 = vadd.f32 %v940, %v1132
  %v1254 = vadd.f32 %v941, %v1136
  %v1255 = vadd.f32 %v942, %v1135
  %v1256 = vadd.f32 %v943, %v1139
  %v1257 = vadd.f32 %v944, %v1138
  %v1258 = vadd.f32 %v945, %v1142
  %v1259 = vadd.f32 %v946, %v1141
  %v1260 = vadd.f32 %v947, %v1145
  %v1261 = vadd.f32 %v948, %v1144
  %v1262 = vadd.f32 %v949, %v1148
  %v1263 = vadd.f32 %v950, %v1147
  %v1264 = vadd.f32 %v951, %v1151
  %v1265 = vadd.f32 %v952, %v1150
  %v1266 = vadd.f32 %v953, %v1154
  %v1267 = vadd.f32 %v954, %v1153
  %v1268 = vadd.f32 %v955, %v1157
  %v1269 = vadd.f32 %v956, %v1156
  %v1270 = vlaneseq
  %v1271 = vshrl.u32 %v1270, 7
  %v1272 = vsub.s32 5, %v1271
  %v1273 = vrot.slane %v75, %v1272
  %v1274 = vmul.f32 %v841, %v1273
  %v1275 = vmul.f32 %v842, %v1273
  %v1276 = vmul.f32 %v843, %v1273
  %v1277 = vmul.f32 %v844, %v1273
  %v1278 = vmul.f32 %v845, %v1273
  %v1279 = vmul.f32 %v846, %v1273
  %v1280 = vmul.f32 %v847, %v1273
  %v1281 = vmul.f32 %v848, %v1273
  %v1282 = vmul.f32 %v849, %v1273
  %v1283 = vmul.f32 %v850, %v1273
  %v1284 = vmul.f32 %v851, %v1273
  %v1285 = vmul.f32 %v852, %v1273
  %v1286 = vmul.f32 %v853, %v1273
  %v1287 = vmul.f32 %v854, %v1273
  %v1288 = vmul.f32 %v855, %v1273
  %v1289 = vmul.f32 %v856, %v1273
  %v1290 = vmul.f32 %v857, %v1273
  %v1291 = vmul.f32 %v858, %v1273
  %v1292 = vmul.f32 %v859, %v1273
  %v1293 = vmul.f32 %v860, %v1273
  %v1294 = vmul.f32 %v861, %v1273
  %v1295 = vmul.f32 %v862, %v1273
  %v1296 = vmul.f32 %v863, %v1273
  %v1297 = vmul.f32 %v864, %v1273
  %v1298 = vmul.f32 %v865, %v1273
  %v1299 = vmul.f32 %v866, %v1273
  %v1300 = vmul.f32 %v867, %v1273
  %v1301 = vmul.f32 %v868, %v1273
  %v1302 = vmul.f32 %v869, %v1273
  %v1303 = vmul.f32 %v870, %v1273
  %v1304 = vmul.f32 %v871, %v1273
  %v1305 = vmul.f32 %v872, %v1273
  %v1306 = vmul.f32 %v873, %v1273
  %v1307 = vmul.f32 %v874, %v1273
  %v1308 = vmul.f32 %v875, %v1273
  %v1309 = vmul.f32 %v876, %v1273
  %v1310 = vmul.f32 %v877, %v1273
  %v1311 = vmul.f32 %v878, %v1273
  %v1312 = vmul.f32 %v879, %v1273
  %v1313 = vmul.f32 %v880, %v1273
  %v1314 = vmul.f32 %v881, %v1273
  %v1315 = vmul.f32 %v882, %v1273
  %v1316 = vmul.f32 %v883, %v1273
  %v1317 = vmul.f32 %v884, %v1273
  %v1318 = vmul.f32 %v885, %v1273
  %v1319 = vmul.f32 %v886, %v1273
  %v1320 = vmul.f32 %v887, %v1273
  %v1321 = vmul.f32 %v888, %v1273
  %v1322 = vmul.f32 %v889, %v1273
  %v1323 = vmul.f32 %v890, %v1273
  %v1324 = vmul.f32 %v891, %v1273
  %v1325 = vmul.f32 %v892, %v1273
  %v1326 = vmul.f32 %v893, %v1273
  %v1327 = vmul.f32 %v894, %v1273
  %v1328 = vmul.f32 %v895, %v1273
  %v1329 = vmul.f32 %v896, %v1273
  %vm1386 = vcmask 1045504
  %v1387 = vrot.slane %v1274, 2
  %v1388 = vrot.slane %v1275, 2
  %v1389 = vsel %vm1386, %v1387, %v1388
  %v1390 = vrot.slane %v1276, 2
  %v1391 = vrot.slane %v1277, 2
  %v1392 = vsel %vm1386, %v1390, %v1391
  %v1393 = vrot.slane %v1278, 2
  %v1394 = vrot.slane %v1279, 2
  %v1395 = vsel %vm1386, %v1393, %v1394
  %v1396 = vrot.slane %v1280, 2
  %v1397 = vrot.slane %v1281, 2
  %v1398 = vsel %vm1386, %v1396, %v1397
  %v1399 = vrot.slane %v1282, 2
  %v1400 = vrot.slane %v1283, 2
  %v1401 = vsel %vm1386, %v1399, %v1400
  %v1402 = vrot.slane %v1284, 2
  %v1403 = vrot.slane %v1285, 2
  %v1404 = vsel %vm1386, %v1402, %v1403
  %v1405 = vrot.slane %v1286, 2
  %v1406 = vrot.slane %v1287, 2
  %v1407 = vsel %vm1386, %v1405, %v1406
  %v1408 = vrot.slane %v1288, 2
  %v1409 = vrot.slane %v1289, 2
  %v1410 = vsel %vm1386, %v1408, %v1409
  %v1411 = vrot.slane %v1290, 2
  %v1412 = vrot.slane %v1291, 2
  %v1413 = vsel %vm1386, %v1411, %v1412
  %v1414 = vrot.slane %v1292, 2
  %v1415 = vrot.slane %v1293, 2
  %v1416 = vsel %vm1386, %v1414, %v1415
  %v1417 = vrot.slane %v1294, 2
  %v1418 = vrot.slane %v1295, 2
  %v1419 = vsel %vm1386, %v1417, %v1418
  %v1420 = vrot.slane %v1296, 2
  %v1421 = vrot.slane %v1297, 2
  %v1422 = vsel %vm1386, %v1420, %v1421
  %v1423 = vrot.slane %v1298, 2
  %v1424 = vrot.slane %v1299, 2
  %v1425 = vsel %vm1386, %v1423, %v1424
  %v1426 = vrot.slane %v1300, 2
  %v1427 = vrot.slane %v1301, 2
  %v1428 = vsel %vm1386, %v1426, %v1427
  %v1429 = vrot.slane %v1302, 2
  %v1430 = vrot.slane %v1303, 2
  %v1431 = vsel %vm1386, %v1429, %v1430
  %v1432 = vrot.slane %v1304, 2
  %v1433 = vrot.slane %v1305, 2
  %v1434 = vsel %vm1386, %v1432, %v1433
  %v1435 = vrot.slane %v1306, 2
  %v1436 = vrot.slane %v1307, 2
  %v1437 = vsel %vm1386, %v1435, %v1436
  %v1438 = vrot.slane %v1308, 2
  %v1439 = vrot.slane %v1309, 2
  %v1440 = vsel %vm1386, %v1438, %v1439
  %v1441 = vrot.slane %v1310, 2
  %v1442 = vrot.slane %v1311, 2
  %v1443 = vsel %vm1386, %v1441, %v1442
  %v1444 = vrot.slane %v1312, 2
  %v1445 = vrot.slane %v1313, 2
  %v1446 = vsel %vm1386, %v1444, %v1445
  %v1447 = vrot.slane %v1314, 2
  %v1448 = vrot.slane %v1315, 2
  %v1449 = vsel %vm1386, %v1447, %v1448
  %v1450 = vrot.slane %v1316, 2
  %v1451 = vrot.slane %v1317, 2
  %v1452 = vsel %vm1386, %v1450, %v1451
  %v1453 = vrot.slane %v1318, 2
  %v1454 = vrot.slane %v1319, 2
  %v1455 = vsel %vm1386, %v1453, %v1454
  %v1456 = vrot.slane %v1320, 2
  %v1457 = vrot.slane %v1321, 2
  %v1458 = vsel %vm1386, %v1456, %v1457
  %v1459 = vrot.slane %v1322, 2
  %v1460 = vrot.slane %v1323, 2
  %v1461 = vsel %vm1386, %v1459, %v1460
  %v1462 = vrot.slane %v1324, 2
  %v1463 = vrot.slane %v1325, 2
  %v1464 = vsel %vm1386, %v1462, %v1463
  %v1465 = vrot.slane %v1326, 2
  %v1466 = vrot.slane %v1327, 2
  %v1467 = vsel %vm1386, %v1465, %v1466
  %v1468 = vrot.slane %v1328, 2
  %v1469 = vrot.slane %v1329, 2
  %v1470 = vsel %vm1386, %v1468, %v1469
  %v1527 = vadd.f32 %v1214, %v1389
  %v1528 = vadd.f32 %v1215, %v1388
  %v1529 = vadd.f32 %v1216, %v1392
  %v1530 = vadd.f32 %v1217, %v1391
  %v1531 = vadd.f32 %v1218, %v1395
  %v1532 = vadd.f32 %v1219, %v1394
  %v1533 = vadd.f32 %v1220, %v1398
  %v1534 = vadd.f32 %v1221, %v1397
  %v1535 = vadd.f32 %v1222, %v1401
  %v1536 = vadd.f32 %v1223, %v1400
  %v1537 = vadd.f32 %v1224, %v1404
  %v1538 = vadd.f32 %v1225, %v1403
  %v1539 = vadd.f32 %v1226, %v1407
  %v1540 = vadd.f32 %v1227, %v1406
  %v1541 = vadd.f32 %v1228, %v1410
  %v1542 = vadd.f32 %v1229, %v1409
  %v1543 = vadd.f32 %v1230, %v1413
  %v1544 = vadd.f32 %v1231, %v1412
  %v1545 = vadd.f32 %v1232, %v1416
  %v1546 = vadd.f32 %v1233, %v1415
  %v1547 = vadd.f32 %v1234, %v1419
  %v1548 = vadd.f32 %v1235, %v1418
  %v1549 = vadd.f32 %v1236, %v1422
  %v1550 = vadd.f32 %v1237, %v1421
  %v1551 = vadd.f32 %v1238, %v1425
  %v1552 = vadd.f32 %v1239, %v1424
  %v1553 = vadd.f32 %v1240, %v1428
  %v1554 = vadd.f32 %v1241, %v1427
  %v1555 = vadd.f32 %v1242, %v1431
  %v1556 = vadd.f32 %v1243, %v1430
  %v1557 = vadd.f32 %v1244, %v1434
  %v1558 = vadd.f32 %v1245, %v1433
  %v1559 = vadd.f32 %v1246, %v1437
  %v1560 = vadd.f32 %v1247, %v1436
  %v1561 = vadd.f32 %v1248, %v1440
  %v1562 = vadd.f32 %v1249, %v1439
  %v1563 = vadd.f32 %v1250, %v1443
  %v1564 = vadd.f32 %v1251, %v1442
  %v1565 = vadd.f32 %v1252, %v1446
  %v1566 = vadd.f32 %v1253, %v1445
  %v1567 = vadd.f32 %v1254, %v1449
  %v1568 = vadd.f32 %v1255, %v1448
  %v1569 = vadd.f32 %v1256, %v1452
  %v1570 = vadd.f32 %v1257, %v1451
  %v1571 = vadd.f32 %v1258, %v1455
  %v1572 = vadd.f32 %v1259, %v1454
  %v1573 = vadd.f32 %v1260, %v1458
  %v1574 = vadd.f32 %v1261, %v1457
  %v1575 = vadd.f32 %v1262, %v1461
  %v1576 = vadd.f32 %v1263, %v1460
  %v1577 = vadd.f32 %v1264, %v1464
  %v1578 = vadd.f32 %v1265, %v1463
  %v1579 = vadd.f32 %v1266, %v1467
  %v1580 = vadd.f32 %v1267, %v1466
  %v1581 = vadd.f32 %v1268, %v1470
  %v1582 = vadd.f32 %v1269, %v1469
  %v1583 = vsel %vm369, %v1527, 0.0
  %vm1584 = vcmask 29696
  %v1585 = vsel %vm1584, %v1528, 0.0
  %v1586 = vadd.f32 %v1583, %v1585
  %v1587 = vsel %vm369, %v1529, 0.0
  %v1588 = vadd.f32 %v1586, %v1587
  %v1589 = vsel %vm1584, %v1530, 0.0
  %v1590 = vadd.f32 %v1588, %v1589
  %v1591 = vsel %vm369, %v1531, 0.0
  %v1592 = vadd.f32 %v1590, %v1591
  %v1593 = vsel %vm1584, %v1532, 0.0
  %v1594 = vadd.f32 %v1592, %v1593
  %v1595 = vsel %vm369, %v1533, 0.0
  %v1596 = vadd.f32 %v1594, %v1595
  %v1597 = vsel %vm1584, %v1534, 0.0
  %v1598 = vadd.f32 %v1596, %v1597
  %v1599 = vsel %vm369, %v1535, 0.0
  %v1600 = vadd.f32 %v1598, %v1599
  %v1601 = vsel %vm1584, %v1536, 0.0
  %v1602 = vadd.f32 %v1600, %v1601
  %v1603 = vsel %vm369, %v1537, 0.0
  %v1604 = vadd.f32 %v1602, %v1603
  %v1605 = vsel %vm1584, %v1538, 0.0
  %v1606 = vadd.f32 %v1604, %v1605
  %v1607 = vsel %vm369, %v1539, 0.0
  %v1608 = vadd.f32 %v1606, %v1607
  %v1609 = vsel %vm1584, %v1540, 0.0
  %v1610 = vadd.f32 %v1608, %v1609
  %v1611 = vsel %vm369, %v1541, 0.0
  %v1612 = vadd.f32 %v1610, %v1611
  %v1613 = vsel %vm1584, %v1542, 0.0
  %v1614 = vadd.f32 %v1612, %v1613
  %v1615 = vsel %vm369, %v1543, 0.0
  %v1616 = vadd.f32 %v1614, %v1615
  %v1617 = vsel %vm1584, %v1544, 0.0
  %v1618 = vadd.f32 %v1616, %v1617
  %v1619 = vsel %vm369, %v1545, 0.0
  %v1620 = vadd.f32 %v1618, %v1619
  %v1621 = vsel %vm1584, %v1546, 0.0
  %v1622 = vadd.f32 %v1620, %v1621
  %v1623 = vsel %vm369, %v1547, 0.0
  %v1624 = vadd.f32 %v1622, %v1623
  %v1625 = vsel %vm1584, %v1548, 0.0
  %v1626 = vadd.f32 %v1624, %v1625
  %v1627 = vsel %vm369, %v1549, 0.0
  %v1628 = vadd.f32 %v1626, %v1627
  %v1629 = vsel %vm1584, %v1550, 0.0
  %v1630 = vadd.f32 %v1628, %v1629
  %v1631 = vsel %vm369, %v1551, 0.0
  %v1632 = vadd.f32 %v1630, %v1631
  %v1633 = vsel %vm1584, %v1552, 0.0
  %v1634 = vadd.f32 %v1632, %v1633
  %v1635 = vsel %vm369, %v1553, 0.0
  %v1636 = vadd.f32 %v1634, %v1635
  %v1637 = vsel %vm1584, %v1554, 0.0
  %v1638 = vadd.f32 %v1636, %v1637
  %v1639 = vsel %vm369, %v1555, 0.0
  %v1640 = vadd.f32 %v1638, %v1639
  %v1641 = vsel %vm1584, %v1556, 0.0
  %v1642 = vadd.f32 %v1640, %v1641
  %v1643 = vsel %vm369, %v1557, 0.0
  %v1644 = vadd.f32 %v1642, %v1643
  %v1645 = vsel %vm1584, %v1558, 0.0
  %v1646 = vadd.f32 %v1644, %v1645
  %v1647 = vsel %vm369, %v1559, 0.0
  %v1648 = vadd.f32 %v1646, %v1647
  %v1649 = vsel %vm1584, %v1560, 0.0
  %v1650 = vadd.f32 %v1648, %v1649
  %v1651 = vsel %vm369, %v1561, 0.0
  %v1652 = vadd.f32 %v1650, %v1651
  %v1653 = vsel %vm1584, %v1562, 0.0
  %v1654 = vadd.f32 %v1652, %v1653
  %v1655 = vsel %vm369, %v1563, 0.0
  %v1656 = vadd.f32 %v1654, %v1655
  %v1657 = vsel %vm1584, %v1564, 0.0
  %v1658 = vadd.f32 %v1656, %v1657
  %v1659 = vsel %vm369, %v1565, 0.0
  %v1660 = vadd.f32 %v1658, %v1659
  %v1661 = vsel %vm1584, %v1566, 0.0
  %v1662 = vadd.f32 %v1660, %v1661
  %v1663 = vsel %vm369, %v1567, 0.0
  %v1664 = vadd.f32 %v1662, %v1663
  %v1665 = vsel %vm1584, %v1568, 0.0
  %v1666 = vadd.f32 %v1664, %v1665
  %v1667 = vsel %vm369, %v1569, 0.0
  %v1668 = vadd.f32 %v1666, %v1667
  %v1669 = vsel %vm1584, %v1570, 0.0
  %v1670 = vadd.f32 %v1668, %v1669
  %v1671 = vsel %vm369, %v1571, 0.0
  %v1672 = vadd.f32 %v1670, %v1671
  %v1673 = vsel %vm1584, %v1572, 0.0
  %v1674 = vadd.f32 %v1672, %v1673
  %v1675 = vsel %vm369, %v1573, 0.0
  %v1676 = vadd.f32 %v1674, %v1675
  %v1677 = vsel %vm1584, %v1574, 0.0
  %v1678 = vadd.f32 %v1676, %v1677
  %v1679 = vsel %vm369, %v1575, 0.0
  %v1680 = vadd.f32 %v1678, %v1679
  %v1681 = vsel %vm1584, %v1576, 0.0
  %v1682 = vadd.f32 %v1680, %v1681
  %v1683 = vsel %vm369, %v1577, 0.0
  %v1684 = vadd.f32 %v1682, %v1683
  %v1685 = vsel %vm1584, %v1578, 0.0
  %v1686 = vadd.f32 %v1684, %v1685
  %v1687 = vsel %vm369, %v1579, 0.0
  %v1688 = vadd.f32 %v1686, %v1687
  %v1689 = vsel %vm1584, %v1580, 0.0
  %v1690 = vadd.f32 %v1688, %v1689
  %v1691 = vsel %vm369, %v1581, 0.0
  %v1692 = vadd.f32 %v1690, %v1691
  %v1693 = vsel %vm1584, %v1582, 0.0
  %v1694 = vadd.f32 %v1692, %v1693
  %v1695 = vrot.slane %v1694, 4
  %v1696 = vadd.f32 %v1694, %v1695
  %v1697 = vrot.slane %v1696, 2
  %v1698 = vadd.f32 %v1696, %v1697
  %v1699 = vrot.slane %v1698, 1
  %v1700 = vadd.f32 %v1698, %v1699
  %v1701 = vmul.f32 %v1700, 0.0025510204
  %v1702 = vsub.f32 %v1527, %v1701
  %v1703 = vsub.f32 %v1528, %v1701
  %v1704 = vsub.f32 %v1529, %v1701
  %v1705 = vsub.f32 %v1530, %v1701
  %v1706 = vsub.f32 %v1531, %v1701
  %v1707 = vsub.f32 %v1532, %v1701
  %v1708 = vsub.f32 %v1533, %v1701
  %v1709 = vsub.f32 %v1534, %v1701
  %v1710 = vsub.f32 %v1535, %v1701
  %v1711 = vsub.f32 %v1536, %v1701
  %v1712 = vsub.f32 %v1537, %v1701
  %v1713 = vsub.f32 %v1538, %v1701
  %v1714 = vsub.f32 %v1539, %v1701
  %v1715 = vsub.f32 %v1540, %v1701
  %v1716 = vsub.f32 %v1541, %v1701
  %v1717 = vsub.f32 %v1542, %v1701
  %v1718 = vsub.f32 %v1543, %v1701
  %v1719 = vsub.f32 %v1544, %v1701
  %v1720 = vsub.f32 %v1545, %v1701
  %v1721 = vsub.f32 %v1546, %v1701
  %v1722 = vsub.f32 %v1547, %v1701
  %v1723 = vsub.f32 %v1548, %v1701
  %v1724 = vsub.f32 %v1549, %v1701
  %v1725 = vsub.f32 %v1550, %v1701
  %v1726 = vsub.f32 %v1551, %v1701
  %v1727 = vsub.f32 %v1552, %v1701
  %v1728 = vsub.f32 %v1553, %v1701
  %v1729 = vsub.f32 %v1554, %v1701
  %v1730 = vsub.f32 %v1555, %v1701
  %v1731 = vsub.f32 %v1556, %v1701
  %v1732 = vsub.f32 %v1557, %v1701
  %v1733 = vsub.f32 %v1558, %v1701
  %v1734 = vsub.f32 %v1559, %v1701
  %v1735 = vsub.f32 %v1560, %v1701
  %v1736 = vsub.f32 %v1561, %v1701
  %v1737 = vsub.f32 %v1562, %v1701
  %v1738 = vsub.f32 %v1563, %v1701
  %v1739 = vsub.f32 %v1564, %v1701
  %v1740 = vsub.f32 %v1565, %v1701
  %v1741 = vsub.f32 %v1566, %v1701
  %v1742 = vsub.f32 %v1567, %v1701
  %v1743 = vsub.f32 %v1568, %v1701
  %v1744 = vsub.f32 %v1569, %v1701
  %v1745 = vsub.f32 %v1570, %v1701
  %v1746 = vsub.f32 %v1571, %v1701
  %v1747 = vsub.f32 %v1572, %v1701
  %v1748 = vsub.f32 %v1573, %v1701
  %v1749 = vsub.f32 %v1574, %v1701
  %v1750 = vsub.f32 %v1575, %v1701
  %v1751 = vsub.f32 %v1576, %v1701
  %v1752 = vsub.f32 %v1577, %v1701
  %v1753 = vsub.f32 %v1578, %v1701
  %v1754 = vsub.f32 %v1579, %v1701
  %v1755 = vsub.f32 %v1580, %v1701
  %v1756 = vsub.f32 %v1581, %v1701
  %v1757 = vsub.f32 %v1582, %v1701
  %v1758 = vmul.f32 %v1702, %v1702
  %v1759 = vmul.f32 %v1703, %v1703
  %v1760 = vmul.f32 %v1704, %v1704
  %v1761 = vmul.f32 %v1705, %v1705
  %v1762 = vmul.f32 %v1706, %v1706
  %v1763 = vmul.f32 %v1707, %v1707
  %v1764 = vmul.f32 %v1708, %v1708
  %v1765 = vmul.f32 %v1709, %v1709
  %v1766 = vmul.f32 %v1710, %v1710
  %v1767 = vmul.f32 %v1711, %v1711
  %v1768 = vmul.f32 %v1712, %v1712
  %v1769 = vmul.f32 %v1713, %v1713
  %v1770 = vmul.f32 %v1714, %v1714
  %v1771 = vmul.f32 %v1715, %v1715
  %v1772 = vmul.f32 %v1716, %v1716
  %v1773 = vmul.f32 %v1717, %v1717
  %v1774 = vmul.f32 %v1718, %v1718
  %v1775 = vmul.f32 %v1719, %v1719
  %v1776 = vmul.f32 %v1720, %v1720
  %v1777 = vmul.f32 %v1721, %v1721
  %v1778 = vmul.f32 %v1722, %v1722
  %v1779 = vmul.f32 %v1723, %v1723
  %v1780 = vmul.f32 %v1724, %v1724
  %v1781 = vmul.f32 %v1725, %v1725
  %v1782 = vmul.f32 %v1726, %v1726
  %v1783 = vmul.f32 %v1727, %v1727
  %v1784 = vmul.f32 %v1728, %v1728
  %v1785 = vmul.f32 %v1729, %v1729
  %v1786 = vmul.f32 %v1730, %v1730
  %v1787 = vmul.f32 %v1731, %v1731
  %v1788 = vmul.f32 %v1732, %v1732
  %v1789 = vmul.f32 %v1733, %v1733
  %v1790 = vmul.f32 %v1734, %v1734
  %v1791 = vmul.f32 %v1735, %v1735
  %v1792 = vmul.f32 %v1736, %v1736
  %v1793 = vmul.f32 %v1737, %v1737
  %v1794 = vmul.f32 %v1738, %v1738
  %v1795 = vmul.f32 %v1739, %v1739
  %v1796 = vmul.f32 %v1740, %v1740
  %v1797 = vmul.f32 %v1741, %v1741
  %v1798 = vmul.f32 %v1742, %v1742
  %v1799 = vmul.f32 %v1743, %v1743
  %v1800 = vmul.f32 %v1744, %v1744
  %v1801 = vmul.f32 %v1745, %v1745
  %v1802 = vmul.f32 %v1746, %v1746
  %v1803 = vmul.f32 %v1747, %v1747
  %v1804 = vmul.f32 %v1748, %v1748
  %v1805 = vmul.f32 %v1749, %v1749
  %v1806 = vmul.f32 %v1750, %v1750
  %v1807 = vmul.f32 %v1751, %v1751
  %v1808 = vmul.f32 %v1752, %v1752
  %v1809 = vmul.f32 %v1753, %v1753
  %v1810 = vmul.f32 %v1754, %v1754
  %v1811 = vmul.f32 %v1755, %v1755
  %v1812 = vmul.f32 %v1756, %v1756
  %v1813 = vmul.f32 %v1757, %v1757
  %v1814 = vsel %vm369, %v1758, 0.0
  %v1815 = vsel %vm1584, %v1759, 0.0
  %v1816 = vadd.f32 %v1814, %v1815
  %v1817 = vsel %vm369, %v1760, 0.0
  %v1818 = vadd.f32 %v1816, %v1817
  %v1819 = vsel %vm1584, %v1761, 0.0
  %v1820 = vadd.f32 %v1818, %v1819
  %v1821 = vsel %vm369, %v1762, 0.0
  %v1822 = vadd.f32 %v1820, %v1821
  %v1823 = vsel %vm1584, %v1763, 0.0
  %v1824 = vadd.f32 %v1822, %v1823
  %v1825 = vsel %vm369, %v1764, 0.0
  %v1826 = vadd.f32 %v1824, %v1825
  %v1827 = vsel %vm1584, %v1765, 0.0
  %v1828 = vadd.f32 %v1826, %v1827
  %v1829 = vsel %vm369, %v1766, 0.0
  %v1830 = vadd.f32 %v1828, %v1829
  %v1831 = vsel %vm1584, %v1767, 0.0
  %v1832 = vadd.f32 %v1830, %v1831
  %v1833 = vsel %vm369, %v1768, 0.0
  %v1834 = vadd.f32 %v1832, %v1833
  %v1835 = vsel %vm1584, %v1769, 0.0
  %v1836 = vadd.f32 %v1834, %v1835
  %v1837 = vsel %vm369, %v1770, 0.0
  %v1838 = vadd.f32 %v1836, %v1837
  %v1839 = vsel %vm1584, %v1771, 0.0
  %v1840 = vadd.f32 %v1838, %v1839
  %v1841 = vsel %vm369, %v1772, 0.0
  %v1842 = vadd.f32 %v1840, %v1841
  %v1843 = vsel %vm1584, %v1773, 0.0
  %v1844 = vadd.f32 %v1842, %v1843
  %v1845 = vsel %vm369, %v1774, 0.0
  %v1846 = vadd.f32 %v1844, %v1845
  %v1847 = vsel %vm1584, %v1775, 0.0
  %v1848 = vadd.f32 %v1846, %v1847
  %v1849 = vsel %vm369, %v1776, 0.0
  %v1850 = vadd.f32 %v1848, %v1849
  %v1851 = vsel %vm1584, %v1777, 0.0
  %v1852 = vadd.f32 %v1850, %v1851
  %v1853 = vsel %vm369, %v1778, 0.0
  %v1854 = vadd.f32 %v1852, %v1853
  %v1855 = vsel %vm1584, %v1779, 0.0
  %v1856 = vadd.f32 %v1854, %v1855
  %v1857 = vsel %vm369, %v1780, 0.0
  %v1858 = vadd.f32 %v1856, %v1857
  %v1859 = vsel %vm1584, %v1781, 0.0
  %v1860 = vadd.f32 %v1858, %v1859
  %v1861 = vsel %vm369, %v1782, 0.0
  %v1862 = vadd.f32 %v1860, %v1861
  %v1863 = vsel %vm1584, %v1783, 0.0
  %v1864 = vadd.f32 %v1862, %v1863
  %v1865 = vsel %vm369, %v1784, 0.0
  %v1866 = vadd.f32 %v1864, %v1865
  %v1867 = vsel %vm1584, %v1785, 0.0
  %v1868 = vadd.f32 %v1866, %v1867
  %v1869 = vsel %vm369, %v1786, 0.0
  %v1870 = vadd.f32 %v1868, %v1869
  %v1871 = vsel %vm1584, %v1787, 0.0
  %v1872 = vadd.f32 %v1870, %v1871
  %v1873 = vsel %vm369, %v1788, 0.0
  %v1874 = vadd.f32 %v1872, %v1873
  %v1875 = vsel %vm1584, %v1789, 0.0
  %v1876 = vadd.f32 %v1874, %v1875
  %v1877 = vsel %vm369, %v1790, 0.0
  %v1878 = vadd.f32 %v1876, %v1877
  %v1879 = vsel %vm1584, %v1791, 0.0
  %v1880 = vadd.f32 %v1878, %v1879
  %v1881 = vsel %vm369, %v1792, 0.0
  %v1882 = vadd.f32 %v1880, %v1881
  %v1883 = vsel %vm1584, %v1793, 0.0
  %v1884 = vadd.f32 %v1882, %v1883
  %v1885 = vsel %vm369, %v1794, 0.0
  %v1886 = vadd.f32 %v1884, %v1885
  %v1887 = vsel %vm1584, %v1795, 0.0
  %v1888 = vadd.f32 %v1886, %v1887
  %v1889 = vsel %vm369, %v1796, 0.0
  %v1890 = vadd.f32 %v1888, %v1889
  %v1891 = vsel %vm1584, %v1797, 0.0
  %v1892 = vadd.f32 %v1890, %v1891
  %v1893 = vsel %vm369, %v1798, 0.0
  %v1894 = vadd.f32 %v1892, %v1893
  %v1895 = vsel %vm1584, %v1799, 0.0
  %v1896 = vadd.f32 %v1894, %v1895
  %v1897 = vsel %vm369, %v1800, 0.0
  %v1898 = vadd.f32 %v1896, %v1897
  %v1899 = vsel %vm1584, %v1801, 0.0
  %v1900 = vadd.f32 %v1898, %v1899
  %v1901 = vsel %vm369, %v1802, 0.0
  %v1902 = vadd.f32 %v1900, %v1901
  %v1903 = vsel %vm1584, %v1803, 0.0
  %v1904 = vadd.f32 %v1902, %v1903
  %v1905 = vsel %vm369, %v1804, 0.0
  %v1906 = vadd.f32 %v1904, %v1905
  %v1907 = vsel %vm1584, %v1805, 0.0
  %v1908 = vadd.f32 %v1906, %v1907
  %v1909 = vsel %vm369, %v1806, 0.0
  %v1910 = vadd.f32 %v1908, %v1909
  %v1911 = vsel %vm1584, %v1807, 0.0
  %v1912 = vadd.f32 %v1910, %v1911
  %v1913 = vsel %vm369, %v1808, 0.0
  %v1914 = vadd.f32 %v1912, %v1913
  %v1915 = vsel %vm1584, %v1809, 0.0
  %v1916 = vadd.f32 %v1914, %v1915
  %v1917 = vsel %vm369, %v1810, 0.0
  %v1918 = vadd.f32 %v1916, %v1917
  %v1919 = vsel %vm1584, %v1811, 0.0
  %v1920 = vadd.f32 %v1918, %v1919
  %v1921 = vsel %vm369, %v1812, 0.0
  %v1922 = vadd.f32 %v1920, %v1921
  %v1923 = vsel %vm1584, %v1813, 0.0
  %v1924 = vadd.f32 %v1922, %v1923
  %v1925 = vrot.slane %v1924, 4
  %v1926 = vadd.f32 %v1924, %v1925
  %v1927 = vrot.slane %v1926, 2
  %v1928 = vadd.f32 %v1926, %v1927
  %v1929 = vrot.slane %v1928, 1
  %v1930 = vadd.f32 %v1928, %v1929
  %v1931 = vmul.f32 %v1930, 0.0025510204
  %v1932 = vadd.f32 %v1931, 1e-05
  %v1933 = vrsqrt.pop %v1932
  %v1934 = vmul.f32 %v76, %v1933
  %v1935 = vlaneseq
  %v1936 = vshrl.u32 %v1935, 7
  %v1937 = vsub.s32 0, %v1936
  %v1938 = vrot.slane %v1934, %v1937
  %v1939 = vmul.f32 %v1702, %v1938
  %v1940 = vmul.f32 %v1703, %v1938
  %v1941 = vmul.f32 %v1704, %v1938
  %v1942 = vmul.f32 %v1705, %v1938
  %v1943 = vmul.f32 %v1706, %v1938
  %v1944 = vmul.f32 %v1707, %v1938
  %v1945 = vmul.f32 %v1708, %v1938
  %v1946 = vmul.f32 %v1709, %v1938
  %v1947 = vmul.f32 %v1710, %v1938
  %v1948 = vmul.f32 %v1711, %v1938
  %v1949 = vmul.f32 %v1712, %v1938
  %v1950 = vmul.f32 %v1713, %v1938
  %v1951 = vmul.f32 %v1714, %v1938
  %v1952 = vmul.f32 %v1715, %v1938
  %v1953 = vmul.f32 %v1716, %v1938
  %v1954 = vmul.f32 %v1717, %v1938
  %v1955 = vmul.f32 %v1718, %v1938
  %v1956 = vmul.f32 %v1719, %v1938
  %v1957 = vmul.f32 %v1720, %v1938
  %v1958 = vmul.f32 %v1721, %v1938
  %v1959 = vmul.f32 %v1722, %v1938
  %v1960 = vmul.f32 %v1723, %v1938
  %v1961 = vmul.f32 %v1724, %v1938
  %v1962 = vmul.f32 %v1725, %v1938
  %v1963 = vmul.f32 %v1726, %v1938
  %v1964 = vmul.f32 %v1727, %v1938
  %v1965 = vmul.f32 %v1728, %v1938
  %v1966 = vmul.f32 %v1729, %v1938
  %v1967 = vmul.f32 %v1730, %v1938
  %v1968 = vmul.f32 %v1731, %v1938
  %v1969 = vmul.f32 %v1732, %v1938
  %v1970 = vmul.f32 %v1733, %v1938
  %v1971 = vmul.f32 %v1734, %v1938
  %v1972 = vmul.f32 %v1735, %v1938
  %v1973 = vmul.f32 %v1736, %v1938
  %v1974 = vmul.f32 %v1737, %v1938
  %v1975 = vmul.f32 %v1738, %v1938
  %v1976 = vmul.f32 %v1739, %v1938
  %v1977 = vmul.f32 %v1740, %v1938
  %v1978 = vmul.f32 %v1741, %v1938
  %v1979 = vmul.f32 %v1742, %v1938
  %v1980 = vmul.f32 %v1743, %v1938
  %v1981 = vmul.f32 %v1744, %v1938
  %v1982 = vmul.f32 %v1745, %v1938
  %v1983 = vmul.f32 %v1746, %v1938
  %v1984 = vmul.f32 %v1747, %v1938
  %v1985 = vmul.f32 %v1748, %v1938
  %v1986 = vmul.f32 %v1749, %v1938
  %v1987 = vmul.f32 %v1750, %v1938
  %v1988 = vmul.f32 %v1751, %v1938
  %v1989 = vmul.f32 %v1752, %v1938
  %v1990 = vmul.f32 %v1753, %v1938
  %v1991 = vmul.f32 %v1754, %v1938
  %v1992 = vmul.f32 %v1755, %v1938
  %v1993 = vmul.f32 %v1756, %v1938
  %v1994 = vmul.f32 %v1757, %v1938
  %v1995 = vlaneseq
  %v1996 = vshrl.u32 %v1995, 7
  %v1997 = vsub.s32 1, %v1996
  %v1998 = vrot.slane %v76, %v1997
  %v1999 = vadd.f32 %v1939, %v1998
  %v2000 = vadd.f32 %v1940, %v1998
  %v2001 = vadd.f32 %v1941, %v1998
  %v2002 = vadd.f32 %v1942, %v1998
  %v2003 = vadd.f32 %v1943, %v1998
  %v2004 = vadd.f32 %v1944, %v1998
  %v2005 = vadd.f32 %v1945, %v1998
  %v2006 = vadd.f32 %v1946, %v1998
  %v2007 = vadd.f32 %v1947, %v1998
  %v2008 = vadd.f32 %v1948, %v1998
  %v2009 = vadd.f32 %v1949, %v1998
  %v2010 = vadd.f32 %v1950, %v1998
  %v2011 = vadd.f32 %v1951, %v1998
  %v2012 = vadd.f32 %v1952, %v1998
  %v2013 = vadd.f32 %v1953, %v1998
  %v2014 = vadd.f32 %v1954, %v1998
  %v2015 = vadd.f32 %v1955, %v1998
  %v2016 = vadd.f32 %v1956, %v1998
  %v2017 = vadd.f32 %v1957, %v1998
  %v2018 = vadd.f32 %v1958, %v1998
  %v2019 = vadd.f32 %v1959, %v1998
  %v2020 = vadd.f32 %v1960, %v1998
  %v2021 = vadd.f32 %v1961, %v1998
  %v2022 = vadd.f32 %v1962, %v1998
  %v2023 = vadd.f32 %v1963, %v1998
  %v2024 = vadd.f32 %v1964, %v1998
  %v2025 = vadd.f32 %v1965, %v1998
  %v2026 = vadd.f32 %v1966, %v1998
  %v2027 = vadd.f32 %v1967, %v1998
  %v2028 = vadd.f32 %v1968, %v1998
  %v2029 = vadd.f32 %v1969, %v1998
  %v2030 = vadd.f32 %v1970, %v1998
  %v2031 = vadd.f32 %v1971, %v1998
  %v2032 = vadd.f32 %v1972, %v1998
  %v2033 = vadd.f32 %v1973, %v1998
  %v2034 = vadd.f32 %v1974, %v1998
  %v2035 = vadd.f32 %v1975, %v1998
  %v2036 = vadd.f32 %v1976, %v1998
  %v2037 = vadd.f32 %v1977, %v1998
  %v2038 = vadd.f32 %v1978, %v1998
  %v2039 = vadd.f32 %v1979, %v1998
  %v2040 = vadd.f32 %v1980, %v1998
  %v2041 = vadd.f32 %v1981, %v1998
  %v2042 = vadd.f32 %v1982, %v1998
  %v2043 = vadd.f32 %v1983, %v1998
  %v2044 = vadd.f32 %v1984, %v1998
  %v2045 = vadd.f32 %v1985, %v1998
  %v2046 = vadd.f32 %v1986, %v1998
  %v2047 = vadd.f32 %v1987, %v1998
  %v2048 = vadd.f32 %v1988, %v1998
  %v2049 = vadd.f32 %v1989, %v1998
  %v2050 = vadd.f32 %v1990, %v1998
  %v2051 = vadd.f32 %v1991, %v1998
  %v2052 = vadd.f32 %v1992, %v1998
  %v2053 = vadd.f32 %v1993, %v1998
  %v2054 = vadd.f32 %v1994, %v1998
  %v2055 = vmax.f32 %v1999, 0.0
  %v2056 = vmax.f32 %v2000, 0.0
  %v2057 = vmax.f32 %v2001, 0.0
  %v2058 = vmax.f32 %v2002, 0.0
  %v2059 = vmax.f32 %v2003, 0.0
  %v2060 = vmax.f32 %v2004, 0.0
  %v2061 = vmax.f32 %v2005, 0.0
  %v2062 = vmax.f32 %v2006, 0.0
  %v2063 = vmax.f32 %v2007, 0.0
  %v2064 = vmax.f32 %v2008, 0.0
  %v2065 = vmax.f32 %v2009, 0.0
  %v2066 = vmax.f32 %v2010, 0.0
  %v2067 = vmax.f32 %v2011, 0.0
  %v2068 = vmax.f32 %v2012, 0.0
  %v2069 = vmax.f32 %v2013, 0.0
  %v2070 = vmax.f32 %v2014, 0.0
  %v2071 = vmax.f32 %v2015, 0.0
  %v2072 = vmax.f32 %v2016, 0.0
  %v2073 = vmax.f32 %v2017, 0.0
  %v2074 = vmax.f32 %v2018, 0.0
  %v2075 = vmax.f32 %v2019, 0.0
  %v2076 = vmax.f32 %v2020, 0.0
  %v2077 = vmax.f32 %v2021, 0.0
  %v2078 = vmax.f32 %v2022, 0.0
  %v2079 = vmax.f32 %v2023, 0.0
  %v2080 = vmax.f32 %v2024, 0.0
  %v2081 = vmax.f32 %v2025, 0.0
  %v2082 = vmax.f32 %v2026, 0.0
  %v2083 = vmax.f32 %v2027, 0.0
  %v2084 = vmax.f32 %v2028, 0.0
  %v2085 = vmax.f32 %v2029, 0.0
  %v2086 = vmax.f32 %v2030, 0.0
  %v2087 = vmax.f32 %v2031, 0.0
  %v2088 = vmax.f32 %v2032, 0.0
  %v2089 = vmax.f32 %v2033, 0.0
  %v2090 = vmax.f32 %v2034, 0.0
  %v2091 = vmax.f32 %v2035, 0.0
  %v2092 = vmax.f32 %v2036, 0.0
  %v2093 = vmax.f32 %v2037, 0.0
  %v2094 = vmax.f32 %v2038, 0.0
  %v2095 = vmax.f32 %v2039, 0.0
  %v2096 = vmax.f32 %v2040, 0.0
  %v2097 = vmax.f32 %v2041, 0.0
  %v2098 = vmax.f32 %v2042, 0.0
  %v2099 = vmax.f32 %v2043, 0.0
  %v2100 = vmax.f32 %v2044, 0.0
  %v2101 = vmax.f32 %v2045, 0.0
  %v2102 = vmax.f32 %v2046, 0.0
  %v2103 = vmax.f32 %v2047, 0.0
  %v2104 = vmax.f32 %v2048, 0.0
  %v2105 = vmax.f32 %v2049, 0.0
  %v2106 = vmax.f32 %v2050, 0.0
  %v2107 = vmax.f32 %v2051, 0.0
  %v2108 = vmax.f32 %v2052, 0.0
  %v2109 = vmax.f32 %v2053, 0.0
  %v2110 = vmax.f32 %v2054, 0.0
  %2111 = vst.msk [vmem:[%s2] sm:$0xff] %vm369, %v2055
  %2112 = vst.msk [vmem:[%s2 + $0x8] sm:$0x3f] %vm1584, %v2056
  %2113 = vst.msk [vmem:[%s2 + $0x10] sm:$0xff] %vm369, %v2057
  %2114 = vst.msk [vmem:[%s2 + $0x18] sm:$0x3f] %vm1584, %v2058
  %2115 = vst.msk [vmem:[%s2 + $0x20] sm:$0xff] %vm369, %v2059
  %2116 = vst.msk [vmem:[%s2 + $0x28] sm:$0x3f] %vm1584, %v2060
  %2117 = vst.msk [vmem:[%s2 + $0x30] sm:$0xff] %vm369, %v2061
  %2118 = vst.msk [vmem:[%s2 + $0x38] sm:$0x3f] %vm1584, %v2062
  %2119 = vst.msk [vmem:[%s2 + $0x40] sm:$0xff] %vm369, %v2063
  %2120 = vst.msk [vmem:[%s2 + $0x48] sm:$0x3f] %vm1584, %v2064
  %2121 = vst.msk [vmem:[%s2 + $0x50] sm:$0xff] %vm369, %v2065
  %2122 = vst.msk [vmem:[%s2 + $0x58] sm:$0x3f] %vm1584, %v2066
  %2123 = vst.msk [vmem:[%s2 + $0x60] sm:$0xff] %vm369, %v2067
  %2124 = vst.msk [vmem:[%s2 + $0x68] sm:$0x3f] %vm1584, %v2068
  %2125 = vst.msk [vmem:[%s2 + $0x70] sm:$0xff] %vm369, %v2069
  %2126 = vst.msk [vmem:[%s2 + $0x78] sm:$0x3f] %vm1584, %v2070
  %2127 = vst.msk [vmem:[%s2 + $0x80] sm:$0xff] %vm369, %v2071
  %2128 = vst.msk [vmem:[%s2 + $0x88] sm:$0x3f] %vm1584, %v2072
  %2129 = vst.msk [vmem:[%s2 + $0x90] sm:$0xff] %vm369, %v2073
  %2130 = vst.msk [vmem:[%s2 + $0x98] sm:$0x3f] %vm1584, %v2074
  %2131 = vst.msk [vmem:[%s2 + $0xa0] sm:$0xff] %vm369, %v2075
  %2132 = vst.msk [vmem:[%s2 + $0xa8] sm:$0x3f] %vm1584, %v2076
  %2133 = vst.msk [vmem:[%s2 + $0xb0] sm:$0xff] %vm369, %v2077
  %2134 = vst.msk [vmem:[%s2 + $0xb8] sm:$0x3f] %vm1584, %v2078
  %2135 = vst.msk [vmem:[%s2 + $0xc0] sm:$0xff] %vm369, %v2079
  %2136 = vst.msk [vmem:[%s2 + $0xc8] sm:$0x3f] %vm1584, %v2080
  %2137 = vst.msk [vmem:[%s2 + $0xd0] sm:$0xff] %vm369, %v2081
  %2138 = vst.msk [vmem:[%s2 + $0xd8] sm:$0x3f] %vm1584, %v2082
  %2139 = vst.msk [vmem:[%s2 + $0xe0] sm:$0xff] %vm369, %v2083
  %2140 = vst.msk [vmem:[%s2 + $0xe8] sm:$0x3f] %vm1584, %v2084
  %2141 = vst.msk [vmem:[%s2 + $0xf0] sm:$0xff] %vm369, %v2085
  %2142 = vst.msk [vmem:[%s2 + $0xf8] sm:$0x3f] %vm1584, %v2086
  %2143 = vst.msk [vmem:[%s2 + $0x100] sm:$0xff] %vm369, %v2087
  %2144 = vst.msk [vmem:[%s2 + $0x108] sm:$0x3f] %vm1584, %v2088
  %2145 = vst.msk [vmem:[%s2 + $0x110] sm:$0xff] %vm369, %v2089
  %2146 = vst.msk [vmem:[%s2 + $0x118] sm:$0x3f] %vm1584, %v2090
  %2147 = vst.msk [vmem:[%s2 + $0x120] sm:$0xff] %vm369, %v2091
  %2148 = vst.msk [vmem:[%s2 + $0x128] sm:$0x3f] %vm1584, %v2092
  %2149 = vst.msk [vmem:[%s2 + $0x130] sm:$0xff] %vm369, %v2093
  %2150 = vst.msk [vmem:[%s2 + $0x138] sm:$0x3f] %vm1584, %v2094
  %2151 = vst.msk [vmem:[%s2 + $0x140] sm:$0xff] %vm369, %v2095
  %2152 = vst.msk [vmem:[%s2 + $0x148] sm:$0x3f] %vm1584, %v2096
  %2153 = vst.msk [vmem:[%s2 + $0x150] sm:$0xff] %vm369, %v2097
  %2154 = vst.msk [vmem:[%s2 + $0x158] sm:$0x3f] %vm1584, %v2098
  %2155 = vst.msk [vmem:[%s2 + $0x160] sm:$0xff] %vm369, %v2099
  %2156 = vst.msk [vmem:[%s2 + $0x168] sm:$0x3f] %vm1584, %v2100
  %2157 = vst.msk [vmem:[%s2 + $0x170] sm:$0xff] %vm369, %v2101
  %2158 = vst.msk [vmem:[%s2 + $0x178] sm:$0x3f] %vm1584, %v2102
  %2159 = vst.msk [vmem:[%s2 + $0x180] sm:$0xff] %vm369, %v2103
  %2160 = vst.msk [vmem:[%s2 + $0x188] sm:$0x3f] %vm1584, %v2104
  %2161 = vst.msk [vmem:[%s2 + $0x190] sm:$0xff] %vm369, %v2105
  %2162 = vst.msk [vmem:[%s2 + $0x198] sm:$0x3f] %vm1584, %v2106
  %2163 = vst.msk [vmem:[%s2 + $0x1a0] sm:$0xff] %vm369, %v2107
  %2164 = vst.msk [vmem:[%s2 + $0x1a8] sm:$0x3f] %vm1584, %v2108
  %2165 = vst.msk [vmem:[%s2 + $0x1b0] sm:$0xff] %vm369, %v2109
  %2166 = vst.msk [vmem:[%s2 + $0x1b8] sm:$0x3f] %vm1584, %v2110
  // Predicated region
  $region10: #{tpu_custom_call.1} parent=0 // pred_check
    _
  $region11: #{tpu_custom_call.1} parent=0 // pred_check_branch
    %2168 = sbr.rel (0) target = $region13
  $region12: #{tpu_custom_call.1} parent=0 // pred_region
    _
  $region13: #{tpu_custom_call.1} parent=0 // pred_fallthru
    _
  // Predicated region
  $region14: #{tpu_custom_call.1} parent=0 // pred_check
    _
  $region15: #{tpu_custom_call.1} parent=0 // pred_check_branch
    %2170 = sbr.rel (0) target = $region17
  $region16: #{tpu_custom_call.1} parent=0 // pred_region
    _
  $region17: #{tpu_custom_call.1} parent=0 // pred_fallthru
    _

</llo_original>
